<compile_context>
chip_gen: v7x
topology: tpu7x:2x2x1
jax: 0.10.0
libtpu: 0.0.40
codegen_flags: <defaults>
</compile_context>

<pallas_src>
import jax
import jax.numpy as jnp
from jax.experimental import pallas as pl
from jax.experimental.pallas import tpu as pltpu

MINF = -1e20


def self_attention_kernel(mask_ref, vals_ref, keys_ref, qs_ref,
                          wv_ref, wk_ref, wq_ref, wfc_ref, bfc_ref,
                          out_ref):
    # Per-grid-step shapes:
    #   mask_ref : (H, Bt, Lq, Lk) f32 additive bias (0 or MINF)
    #   vals/keys: (Bt*Lk, S)      bf16 (batch rows flattened host-side)
    #   qs       : (Bt*Lq, S)      bf16
    #   wv/wk/wq : (S, S)          bf16, pre-transposed (in, out); 1/sqrt(S)
    #                              already folded into wq
    #   wfc      : (H, d, S)       bf16, fc weight pre-transposed & head-split
    #   bfc      : (1, S)          f32
    #   out      : (Bt*Lq, S)      f32
    H, Bt, Lq, Lk = mask_ref.shape
    S = wv_ref.shape[0]
    d = S // H

    xv = vals_ref[...]
    xk = keys_ref[...]
    xq = qs_ref[...]

    # Input projections (nn.Linear, bias=False). Weights already transposed ->
    # MXU contracts directly, no XLU transpose per grid step.
    v2 = jnp.dot(xv, wv_ref[...],
                 preferred_element_type=jnp.float32).astype(jnp.bfloat16)
    k2 = jnp.dot(xk, wk_ref[...],
                 preferred_element_type=jnp.float32).astype(jnp.bfloat16)
    q2 = jnp.dot(xq, wq_ref[...],
                 preferred_element_type=jnp.float32).astype(jnp.bfloat16)

    bias = bfc_ref[...]                                   # (1, S) f32
    out_acc = jnp.zeros((Bt * Lq, S), jnp.float32)

    # Per-head attention, batched over the Bt batch elements of this block.
    # No k transpose (einsum contracts the trailing d of both operands) and no
    # concatenate: each head's context is folded straight into its slice of
    # the output projection and accumulated.
    for h in range(H):
        lo = h * d
        qh = q2[:, lo:lo + d].reshape(Bt, Lq, d)
        kh = k2[:, lo:lo + d].reshape(Bt, Lk, d)
        vh = v2[:, lo:lo + d].reshape(Bt, Lk, d)

        s = jnp.einsum('bqd,bkd->bqk', qh, kh,
                       preferred_element_type=jnp.float32)      # (Bt, Lq, Lk)
        s = s + mask_ref[h]                                     # additive mask

        # Softmax kept in f32 (v5e has no bf16 VPU/EUP); the divide goes to the
        # otherwise-idle EUP reciprocal slot.
        s = s - jnp.max(s, axis=-1, keepdims=True)
        e = jnp.exp(s)
        p = e * pl.reciprocal(jnp.sum(e, axis=-1, keepdims=True), approx=True)

        ctx = jnp.einsum('bqk,bkd->bqd', p.astype(jnp.bfloat16), vh,
                         preferred_element_type=jnp.float32)    # (Bt, Lq, d)
        out_acc = out_acc + jnp.dot(
            ctx.reshape(Bt * Lq, d).astype(jnp.bfloat16), wfc_ref[h],
            preferred_element_type=jnp.float32)

    out_ref[...] = (out_acc + bias).astype(out_ref.dtype)


def self_attention(vals, keys, qs, mask, wv, wk, wq, wfc, bfc, n_head,
                   block_b=None):
    B, Lq, S = qs.shape
    Lk = keys.shape[1]
    H = n_head
    d = S // H

    if block_b is None:
        # Batch several elements per grid step (amortize ~0.35us/step), but
        # keep >= 2 parallel grid blocks so v7x's second TensorCore has work.
        block_b = max(1, B // 2)
        while B % block_b:
            block_b -= 1
    assert B % block_b == 0
    n_blocks = B // block_b

    # --- host-side (free, plain XLA) parameter preprocessing ----------------
    inv_scale = 1.0 / (float(S) ** 0.5)
    wv_t = wv.T.astype(jnp.bfloat16)                       # (in, out)
    wk_t = wk.T.astype(jnp.bfloat16)
    wq_t = (wq.T * inv_scale).astype(jnp.bfloat16)         # fold 1/sqrt(size)
    wfc_h = wfc.T.reshape(H, d, S).astype(jnp.bfloat16)    # head-split fc weight
    bfc2 = bfc.reshape(1, S).astype(jnp.float32)

    mask_bias = jnp.where(mask == 0, MINF, 0.0).astype(jnp.float32)
    mask_bias = jnp.transpose(mask_bias, (1, 0, 2, 3))     # (H, B, Lq, Lk)

    vals_f = vals.astype(jnp.bfloat16).reshape(B * Lk, S)
    keys_f = keys.astype(jnp.bfloat16).reshape(B * Lk, S)
    qs_f = qs.astype(jnp.bfloat16).reshape(B * Lq, S)

    out_flat = pl.pallas_call(
        self_attention_kernel,
        out_shape=jax.ShapeDtypeStruct((B * Lq, S), jnp.float32),
        grid_spec=pltpu.PrefetchScalarGridSpec(
            num_scalar_prefetch=0,
            grid=(n_blocks,),
            in_specs=[
                pl.BlockSpec((H, block_b, Lq, Lk), lambda b: (0, b, 0, 0)),  # mask bias
                pl.BlockSpec((block_b * Lk, S), lambda b: (b, 0)),           # vals
                pl.BlockSpec((block_b * Lk, S), lambda b: (b, 0)),           # keys
                pl.BlockSpec((block_b * Lq, S), lambda b: (b, 0)),           # qs
                # Constant-index weight blocks. For large S on v7x (64 MiB
                # VMEM) single-buffer these (pipeline_mode=pl.Buffered(1)) or
                # raise vmem_limit_bytes; at S=32 it is irrelevant.
                pl.BlockSpec((S, S), lambda b: (0, 0)),                      # W_val^T
                pl.BlockSpec((S, S), lambda b: (0, 0)),                      # W_key^T
                pl.BlockSpec((S, S), lambda b: (0, 0)),                      # W_q^T (scaled)
                pl.BlockSpec((H, d, S), lambda b: (0, 0, 0)),                # W_fc^T per head
                pl.BlockSpec((1, S), lambda b: (0, 0)),                      # b_fc
            ],
            out_specs=pl.BlockSpec((block_b * Lq, S), lambda b: (b, 0)),
        ),
        compiler_params=pltpu.CompilerParams(
            dimension_semantics=("parallel",)),
    )(mask_bias, vals_f, keys_f, qs_f, wv_t, wk_t, wq_t, wfc_h, bfc2)

    return out_flat.reshape(B, Lq, S)


def reference(vals, keys, qs, mask, wv, wk, wq, wfc, bfc, n_head):
    """Pure-JAX f32 mirror of the PyTorch forward."""
    B, Lq, S = qs.shape
    d = S // n_head
    v = vals @ wv.T
    k = keys @ wk.T
    q = qs @ wq.T
    v = v.reshape(B, -1, n_head, d)
    k = k.reshape(B, -1, n_head, d)
    q = q.reshape(B, -1, n_head, d)
    x = jnp.einsum('aibc,ajbc->abij', q, k)
    x = jnp.where(mask == 0, MINF, x)
    attn = jax.nn.softmax(x / (float(S) ** 0.5), axis=3)
    x = jnp.einsum('abic,acbd->aibd', attn, v)
    x = x.reshape(B, -1, S)
    return x @ wfc.T + bfc


if __name__ == "__main__":
    B, Lq, Lk, S, H = 8, 8, 8, 32, 4

    key = jax.random.PRNGKey(0)
    ks = jax.random.split(key, 8)
    vals = jax.random.normal(ks[0], (B, Lk, S), jnp.float32)
    keys = jax.random.normal(ks[1], (B, Lk, S), jnp.float32)
    qs = jax.random.normal(ks[2], (B, Lq, S), jnp.float32)

    # Deterministic synthetic parameters (PyTorch Linear weight shapes).
    wv = jax.random.normal(ks[3], (S, S), jnp.float32) * 0.1
    wk = jax.random.normal(ks[4], (S, S), jnp.float32) * 0.1
    wq = jax.random.normal(ks[5], (S, S), jnp.float32) * 0.1
    wfc = jax.random.normal(ks[6], (S, S), jnp.float32) * 0.1
    bfc = jax.random.normal(ks[7], (S,), jnp.float32) * 0.1

    # Causal mask broadcast to (B, H, Lq, Lk); 0 => masked.
    causal = jnp.tril(jnp.ones((Lq, Lk), jnp.int32))
    mask = jnp.broadcast_to(causal, (B, H, Lq, Lk))

    out = self_attention(vals, keys, qs, mask, wv, wk, wq, wfc, bfc, H)
    jax.block_until_ready(out)

    ref = reference(vals, keys, qs, mask, wv, wk, wq, wfc, bfc, H)
    assert out.shape == (B, Lq, S)
    # bf16 MXU inputs + EUP approx reciprocal -> compare at bf16 tolerance.
    assert jnp.allclose(out, ref, atol=3e-2, rtol=3e-2), "mismatch vs reference"

    print("KERNEL_OK")
</pallas_src>

<mosaic_0001>
module attributes {stable_mosaic.version = 11 : i64} {
  func.func @self_attention_kernel(%arg0: i32, %arg1: memref<4x4x8x8xf32, #tpu.memory_space<vmem>>, %arg2: memref<32x32xbf16, #tpu.memory_space<vmem>>, %arg3: memref<32x32xbf16, #tpu.memory_space<vmem>>, %arg4: memref<32x32xbf16, #tpu.memory_space<vmem>>, %arg5: memref<32x32xbf16, #tpu.memory_space<vmem>>, %arg6: memref<32x32xbf16, #tpu.memory_space<vmem>>, %arg7: memref<32x32xbf16, #tpu.memory_space<vmem>>, %arg8: memref<4x8x32xbf16, #tpu.memory_space<vmem>>, %arg9: memref<1x32xf32, #tpu.memory_space<vmem>>, %arg10: memref<32x32xf32, #tpu.memory_space<vmem>>) attributes {dimension_semantics = [#tpu.dimension_semantics<parallel>], iteration_bounds = array<i64: 2>, scalar_prefetch = 0 : i64, scratch_operands = 0 : i64, tpu.core_type = #tpu.core_type<tc>, window_params = [{transform_indices = @transform_0, window_bounds = array<i64: 4, 4, 8, 8>}, {transform_indices = @transform_1, window_bounds = array<i64: 32, 32>}, {transform_indices = @transform_2, window_bounds = array<i64: 32, 32>}, {transform_indices = @transform_3, window_bounds = array<i64: 32, 32>}, {pipeline_mode = #tpu.pipeline_mode<synchronous>, transform_indices = @transform_4, window_bounds = array<i64: 32, 32>}, {pipeline_mode = #tpu.pipeline_mode<synchronous>, transform_indices = @transform_5, window_bounds = array<i64: 32, 32>}, {pipeline_mode = #tpu.pipeline_mode<synchronous>, transform_indices = @transform_6, window_bounds = array<i64: 32, 32>}, {pipeline_mode = #tpu.pipeline_mode<synchronous>, transform_indices = @transform_7, window_bounds = array<i64: 4, 8, 32>}, {pipeline_mode = #tpu.pipeline_mode<synchronous>, transform_indices = @transform_8, window_bounds = array<i64: 1, 32>}, {transform_indices = @transform_9, window_bounds = array<i64: 32, 32>}]} {
    %c0 = arith.constant 0 : index
    %c0_0 = arith.constant 0 : index
    %0 = vector.load %arg2[%c0, %c0_0] : memref<32x32xbf16, #tpu.memory_space<vmem>>, vector<32x32xbf16>
    %c0_1 = arith.constant 0 : index
    %c0_2 = arith.constant 0 : index
    %1 = vector.load %arg3[%c0_1, %c0_2] : memref<32x32xbf16, #tpu.memory_space<vmem>>, vector<32x32xbf16>
    %c0_3 = arith.constant 0 : index
    %c0_4 = arith.constant 0 : index
    %2 = vector.load %arg4[%c0_3, %c0_4] : memref<32x32xbf16, #tpu.memory_space<vmem>>, vector<32x32xbf16>
    %c0_5 = arith.constant 0 : index
    %c0_6 = arith.constant 0 : index
    %3 = vector.load %arg5[%c0_5, %c0_6] : memref<32x32xbf16, #tpu.memory_space<vmem>>, vector<32x32xbf16>
    %cst = arith.constant dense<0.000000e+00> : vector<32x32xf32>
    %4 = tpu.matmul %0, %3, %cst {dimension_numbers = #tpu.dot_dimension_numbers<[1], [0], [0], [1], [0, 0, 1, 1], [], []>} : vector<32x32xbf16>, vector<32x32xbf16>, vector<32x32xf32> -> vector<32x32xf32>
    %5 = arith.truncf %4 : vector<32x32xf32> to vector<32x32xbf16>
    %c0_7 = arith.constant 0 : index
    %c0_8 = arith.constant 0 : index
    %6 = vector.load %arg6[%c0_7, %c0_8] : memref<32x32xbf16, #tpu.memory_space<vmem>>, vector<32x32xbf16>
    %cst_9 = arith.constant dense<0.000000e+00> : vector<32x32xf32>
    %7 = tpu.matmul %1, %6, %cst_9 {dimension_numbers = #tpu.dot_dimension_numbers<[1], [0], [0], [1], [0, 0, 1, 1], [], []>} : vector<32x32xbf16>, vector<32x32xbf16>, vector<32x32xf32> -> vector<32x32xf32>
    %8 = arith.truncf %7 : vector<32x32xf32> to vector<32x32xbf16>
    %c0_10 = arith.constant 0 : index
    %c0_11 = arith.constant 0 : index
    %9 = vector.load %arg7[%c0_10, %c0_11] : memref<32x32xbf16, #tpu.memory_space<vmem>>, vector<32x32xbf16>
    %cst_12 = arith.constant dense<0.000000e+00> : vector<32x32xf32>
    %10 = tpu.matmul %2, %9, %cst_12 {dimension_numbers = #tpu.dot_dimension_numbers<[1], [0], [0], [1], [0, 0, 1, 1], [], []>} : vector<32x32xbf16>, vector<32x32xbf16>, vector<32x32xf32> -> vector<32x32xf32>
    %11 = arith.truncf %10 : vector<32x32xf32> to vector<32x32xbf16>
    %c0_13 = arith.constant 0 : index
    %c0_14 = arith.constant 0 : index
    %12 = vector.load %arg9[%c0_13, %c0_14] : memref<1x32xf32, #tpu.memory_space<vmem>>, vector<1x32xf32>
    %cst_15 = arith.constant 0.000000e+00 : f32
    %13 = vector.broadcast %cst_15 : f32 to vector<32x32xf32>
    %14 = vector.extract_strided_slice %11 {offsets = [0, 0], sizes = [32, 8], strides = [1, 1]} : vector<32x32xbf16> to vector<32x8xbf16>
    %15 = vector.shape_cast %14 : vector<32x8xbf16> to vector<4x8x8xbf16>
    %16 = vector.extract_strided_slice %8 {offsets = [0, 0], sizes = [32, 8], strides = [1, 1]} : vector<32x32xbf16> to vector<32x8xbf16>
    %17 = vector.shape_cast %16 : vector<32x8xbf16> to vector<4x8x8xbf16>
    %18 = vector.extract_strided_slice %5 {offsets = [0, 0], sizes = [32, 8], strides = [1, 1]} : vector<32x32xbf16> to vector<32x8xbf16>
    %19 = vector.shape_cast %18 : vector<32x8xbf16> to vector<4x8x8xbf16>
    "tpu.trace_start"() <{level = 10 : i32, message = "bqd,bkd->bqk"}> : () -> ()
    %cst_16 = arith.constant dense<0.000000e+00> : vector<4x8x8xf32>
    %20 = tpu.matmul %15, %17, %cst_16 {dimension_numbers = #tpu.dot_dimension_numbers<[2], [2], [1], [1], [0, 0, 0, 1, 1, 1], [0], [0]>} : vector<4x8x8xbf16>, vector<4x8x8xbf16>, vector<4x8x8xf32> -> vector<4x8x8xf32>
    "tpu.trace_stop"() : () -> ()
    %c0_17 = arith.constant 0 : index
    %c0_18 = arith.constant 0 : index
    %c0_19 = arith.constant 0 : index
    %c0_20 = arith.constant 0 : index
    %21 = vector.load %arg1[%c0_17, %c0_18, %c0_19, %c0_20] : memref<4x4x8x8xf32, #tpu.memory_space<vmem>>, vector<1x4x8x8xf32>
    %22 = vector.shape_cast %21 : vector<1x4x8x8xf32> to vector<4x8x8xf32>
    %23 = arith.addf %20, %22 : vector<4x8x8xf32>
    %cst_21 = arith.constant dense<0xFF800000> : vector<4x8xf32>
    %24 = vector.multi_reduction <maximumf>, %23, %cst_21 [2] : vector<4x8x8xf32> to vector<4x8xf32>
    %25 = vector.shape_cast %24 : vector<4x8xf32> to vector<4x8x1xf32>
    %26 = vector.broadcast %25 : vector<4x8x1xf32> to vector<4x8x8xf32>
    %27 = arith.subf %23, %26 : vector<4x8x8xf32>
    %28 = math.exp %27 : vector<4x8x8xf32>
    %cst_22 = arith.constant dense<0.000000e+00> : vector<4x8xf32>
    %29 = vector.multi_reduction <add>, %28, %cst_22 [2] : vector<4x8x8xf32> to vector<4x8xf32>
    %30 = vector.shape_cast %29 : vector<4x8xf32> to vector<4x8x1xf32>
    %31 = tpu.reciprocal %30 {approx = true} : vector<4x8x1xf32> -> vector<4x8x1xf32>
    %32 = vector.broadcast %31 : vector<4x8x1xf32> to vector<4x8x8xf32>
    %33 = arith.mulf %28, %32 : vector<4x8x8xf32>
    %34 = arith.truncf %33 : vector<4x8x8xf32> to vector<4x8x8xbf16>
    "tpu.trace_start"() <{level = 10 : i32, message = "bqk,bkd->bqd"}> : () -> ()
    %cst_23 = arith.constant dense<0.000000e+00> : vector<4x8x8xf32>
    %35 = tpu.matmul %34, %19, %cst_23 {dimension_numbers = #tpu.dot_dimension_numbers<[2], [1], [1], [2], [0, 0, 0, 1, 1, 2], [0], [0]>} : vector<4x8x8xbf16>, vector<4x8x8xbf16>, vector<4x8x8xf32> -> vector<4x8x8xf32>
    "tpu.trace_stop"() : () -> ()
    %36 = vector.shape_cast %35 : vector<4x8x8xf32> to vector<32x8xf32>
    %37 = arith.truncf %36 : vector<32x8xf32> to vector<32x8xbf16>
    %c0_24 = arith.constant 0 : index
    %c0_25 = arith.constant 0 : index
    %c0_26 = arith.constant 0 : index
    %38 = vector.load %arg8[%c0_24, %c0_25, %c0_26] : memref<4x8x32xbf16, #tpu.memory_space<vmem>>, vector<1x8x32xbf16>
    %39 = vector.shape_cast %38 : vector<1x8x32xbf16> to vector<8x32xbf16>
    %cst_27 = arith.constant dense<0.000000e+00> : vector<32x32xf32>
    %40 = tpu.matmul %37, %39, %cst_27 {dimension_numbers = #tpu.dot_dimension_numbers<[1], [0], [0], [1], [0, 0, 1, 1], [], []>} : vector<32x8xbf16>, vector<8x32xbf16>, vector<32x32xf32> -> vector<32x32xf32>
    %41 = arith.addf %13, %40 : vector<32x32xf32>
    %42 = vector.extract_strided_slice %11 {offsets = [0, 8], sizes = [32, 8], strides = [1, 1]} : vector<32x32xbf16> to vector<32x8xbf16>
    %43 = vector.shape_cast %42 : vector<32x8xbf16> to vector<4x8x8xbf16>
    %44 = vector.extract_strided_slice %8 {offsets = [0, 8], sizes = [32, 8], strides = [1, 1]} : vector<32x32xbf16> to vector<32x8xbf16>
    %45 = vector.shape_cast %44 : vector<32x8xbf16> to vector<4x8x8xbf16>
    %46 = vector.extract_strided_slice %5 {offsets = [0, 8], sizes = [32, 8], strides = [1, 1]} : vector<32x32xbf16> to vector<32x8xbf16>
    %47 = vector.shape_cast %46 : vector<32x8xbf16> to vector<4x8x8xbf16>
    "tpu.trace_start"() <{level = 10 : i32, message = "bqd,bkd->bqk"}> : () -> ()
    %cst_28 = arith.constant dense<0.000000e+00> : vector<4x8x8xf32>
    %48 = tpu.matmul %43, %45, %cst_28 {dimension_numbers = #tpu.dot_dimension_numbers<[2], [2], [1], [1], [0, 0, 0, 1, 1, 1], [0], [0]>} : vector<4x8x8xbf16>, vector<4x8x8xbf16>, vector<4x8x8xf32> -> vector<4x8x8xf32>
    "tpu.trace_stop"() : () -> ()
    %c1 = arith.constant 1 : index
    %c0_29 = arith.constant 0 : index
    %c0_30 = arith.constant 0 : index
    %c0_31 = arith.constant 0 : index
    %49 = vector.load %arg1[%c1, %c0_29, %c0_30, %c0_31] : memref<4x4x8x8xf32, #tpu.memory_space<vmem>>, vector<1x4x8x8xf32>
    %50 = vector.shape_cast %49 : vector<1x4x8x8xf32> to vector<4x8x8xf32>
    %51 = arith.addf %48, %50 : vector<4x8x8xf32>
    %cst_32 = arith.constant dense<0xFF800000> : vector<4x8xf32>
    %52 = vector.multi_reduction <maximumf>, %51, %cst_32 [2] : vector<4x8x8xf32> to vector<4x8xf32>
    %53 = vector.shape_cast %52 : vector<4x8xf32> to vector<4x8x1xf32>
    %54 = vector.broadcast %53 : vector<4x8x1xf32> to vector<4x8x8xf32>
    %55 = arith.subf %51, %54 : vector<4x8x8xf32>
    %56 = math.exp %55 : vector<4x8x8xf32>
    %cst_33 = arith.constant dense<0.000000e+00> : vector<4x8xf32>
    %57 = vector.multi_reduction <add>, %56, %cst_33 [2] : vector<4x8x8xf32> to vector<4x8xf32>
    %58 = vector.shape_cast %57 : vector<4x8xf32> to vector<4x8x1xf32>
    %59 = tpu.reciprocal %58 {approx = true} : vector<4x8x1xf32> -> vector<4x8x1xf32>
    %60 = vector.broadcast %59 : vector<4x8x1xf32> to vector<4x8x8xf32>
    %61 = arith.mulf %56, %60 : vector<4x8x8xf32>
    %62 = arith.truncf %61 : vector<4x8x8xf32> to vector<4x8x8xbf16>
    "tpu.trace_start"() <{level = 10 : i32, message = "bqk,bkd->bqd"}> : () -> ()
    %cst_34 = arith.constant dense<0.000000e+00> : vector<4x8x8xf32>
    %63 = tpu.matmul %62, %47, %cst_34 {dimension_numbers = #tpu.dot_dimension_numbers<[2], [1], [1], [2], [0, 0, 0, 1, 1, 2], [0], [0]>} : vector<4x8x8xbf16>, vector<4x8x8xbf16>, vector<4x8x8xf32> -> vector<4x8x8xf32>
    "tpu.trace_stop"() : () -> ()
    %64 = vector.shape_cast %63 : vector<4x8x8xf32> to vector<32x8xf32>
    %65 = arith.truncf %64 : vector<32x8xf32> to vector<32x8xbf16>
    %c1_35 = arith.constant 1 : index
    %c0_36 = arith.constant 0 : index
    %c0_37 = arith.constant 0 : index
    %66 = vector.load %arg8[%c1_35, %c0_36, %c0_37] : memref<4x8x32xbf16, #tpu.memory_space<vmem>>, vector<1x8x32xbf16>
    %67 = vector.shape_cast %66 : vector<1x8x32xbf16> to vector<8x32xbf16>
    %cst_38 = arith.constant dense<0.000000e+00> : vector<32x32xf32>
    %68 = tpu.matmul %65, %67, %cst_38 {dimension_numbers = #tpu.dot_dimension_numbers<[1], [0], [0], [1], [0, 0, 1, 1], [], []>} : vector<32x8xbf16>, vector<8x32xbf16>, vector<32x32xf32> -> vector<32x32xf32>
    %69 = arith.addf %41, %68 : vector<32x32xf32>
    %70 = vector.extract_strided_slice %11 {offsets = [0, 16], sizes = [32, 8], strides = [1, 1]} : vector<32x32xbf16> to vector<32x8xbf16>
    %71 = vector.shape_cast %70 : vector<32x8xbf16> to vector<4x8x8xbf16>
    %72 = vector.extract_strided_slice %8 {offsets = [0, 16], sizes = [32, 8], strides = [1, 1]} : vector<32x32xbf16> to vector<32x8xbf16>
    %73 = vector.shape_cast %72 : vector<32x8xbf16> to vector<4x8x8xbf16>
    %74 = vector.extract_strided_slice %5 {offsets = [0, 16], sizes = [32, 8], strides = [1, 1]} : vector<32x32xbf16> to vector<32x8xbf16>
    %75 = vector.shape_cast %74 : vector<32x8xbf16> to vector<4x8x8xbf16>
    "tpu.trace_start"() <{level = 10 : i32, message = "bqd,bkd->bqk"}> : () -> ()
    %cst_39 = arith.constant dense<0.000000e+00> : vector<4x8x8xf32>
    %76 = tpu.matmul %71, %73, %cst_39 {dimension_numbers = #tpu.dot_dimension_numbers<[2], [2], [1], [1], [0, 0, 0, 1, 1, 1], [0], [0]>} : vector<4x8x8xbf16>, vector<4x8x8xbf16>, vector<4x8x8xf32> -> vector<4x8x8xf32>
    "tpu.trace_stop"() : () -> ()
    %c2 = arith.constant 2 : index
    %c0_40 = arith.constant 0 : index
    %c0_41 = arith.constant 0 : index
    %c0_42 = arith.constant 0 : index
    %77 = vector.load %arg1[%c2, %c0_40, %c0_41, %c0_42] : memref<4x4x8x8xf32, #tpu.memory_space<vmem>>, vector<1x4x8x8xf32>
    %78 = vector.shape_cast %77 : vector<1x4x8x8xf32> to vector<4x8x8xf32>
    %79 = arith.addf %76, %78 : vector<4x8x8xf32>
    %cst_43 = arith.constant dense<0xFF800000> : vector<4x8xf32>
    %80 = vector.multi_reduction <maximumf>, %79, %cst_43 [2] : vector<4x8x8xf32> to vector<4x8xf32>
    %81 = vector.shape_cast %80 : vector<4x8xf32> to vector<4x8x1xf32>
    %82 = vector.broadcast %81 : vector<4x8x1xf32> to vector<4x8x8xf32>
    %83 = arith.subf %79, %82 : vector<4x8x8xf32>
    %84 = math.exp %83 : vector<4x8x8xf32>
    %cst_44 = arith.constant dense<0.000000e+00> : vector<4x8xf32>
    %85 = vector.multi_reduction <add>, %84, %cst_44 [2] : vector<4x8x8xf32> to vector<4x8xf32>
    %86 = vector.shape_cast %85 : vector<4x8xf32> to vector<4x8x1xf32>
    %87 = tpu.reciprocal %86 {approx = true} : vector<4x8x1xf32> -> vector<4x8x1xf32>
    %88 = vector.broadcast %87 : vector<4x8x1xf32> to vector<4x8x8xf32>
    %89 = arith.mulf %84, %88 : vector<4x8x8xf32>
    %90 = arith.truncf %89 : vector<4x8x8xf32> to vector<4x8x8xbf16>
    "tpu.trace_start"() <{level = 10 : i32, message = "bqk,bkd->bqd"}> : () -> ()
    %cst_45 = arith.constant dense<0.000000e+00> : vector<4x8x8xf32>
    %91 = tpu.matmul %90, %75, %cst_45 {dimension_numbers = #tpu.dot_dimension_numbers<[2], [1], [1], [2], [0, 0, 0, 1, 1, 2], [0], [0]>} : vector<4x8x8xbf16>, vector<4x8x8xbf16>, vector<4x8x8xf32> -> vector<4x8x8xf32>
    "tpu.trace_stop"() : () -> ()
    %92 = vector.shape_cast %91 : vector<4x8x8xf32> to vector<32x8xf32>
    %93 = arith.truncf %92 : vector<32x8xf32> to vector<32x8xbf16>
    %c2_46 = arith.constant 2 : index
    %c0_47 = arith.constant 0 : index
    %c0_48 = arith.constant 0 : index
    %94 = vector.load %arg8[%c2_46, %c0_47, %c0_48] : memref<4x8x32xbf16, #tpu.memory_space<vmem>>, vector<1x8x32xbf16>
    %95 = vector.shape_cast %94 : vector<1x8x32xbf16> to vector<8x32xbf16>
    %cst_49 = arith.constant dense<0.000000e+00> : vector<32x32xf32>
    %96 = tpu.matmul %93, %95, %cst_49 {dimension_numbers = #tpu.dot_dimension_numbers<[1], [0], [0], [1], [0, 0, 1, 1], [], []>} : vector<32x8xbf16>, vector<8x32xbf16>, vector<32x32xf32> -> vector<32x32xf32>
    %97 = arith.addf %69, %96 : vector<32x32xf32>
    %98 = vector.extract_strided_slice %11 {offsets = [0, 24], sizes = [32, 8], strides = [1, 1]} : vector<32x32xbf16> to vector<32x8xbf16>
    %99 = vector.shape_cast %98 : vector<32x8xbf16> to vector<4x8x8xbf16>
    %100 = vector.extract_strided_slice %8 {offsets = [0, 24], sizes = [32, 8], strides = [1, 1]} : vector<32x32xbf16> to vector<32x8xbf16>
    %101 = vector.shape_cast %100 : vector<32x8xbf16> to vector<4x8x8xbf16>
    %102 = vector.extract_strided_slice %5 {offsets = [0, 24], sizes = [32, 8], strides = [1, 1]} : vector<32x32xbf16> to vector<32x8xbf16>
    %103 = vector.shape_cast %102 : vector<32x8xbf16> to vector<4x8x8xbf16>
    "tpu.trace_start"() <{level = 10 : i32, message = "bqd,bkd->bqk"}> : () -> ()
    %cst_50 = arith.constant dense<0.000000e+00> : vector<4x8x8xf32>
    %104 = tpu.matmul %99, %101, %cst_50 {dimension_numbers = #tpu.dot_dimension_numbers<[2], [2], [1], [1], [0, 0, 0, 1, 1, 1], [0], [0]>} : vector<4x8x8xbf16>, vector<4x8x8xbf16>, vector<4x8x8xf32> -> vector<4x8x8xf32>
    "tpu.trace_stop"() : () -> ()
    %c3 = arith.constant 3 : index
    %c0_51 = arith.constant 0 : index
    %c0_52 = arith.constant 0 : index
    %c0_53 = arith.constant 0 : index
    %105 = vector.load %arg1[%c3, %c0_51, %c0_52, %c0_53] : memref<4x4x8x8xf32, #tpu.memory_space<vmem>>, vector<1x4x8x8xf32>
    %106 = vector.shape_cast %105 : vector<1x4x8x8xf32> to vector<4x8x8xf32>
    %107 = arith.addf %104, %106 : vector<4x8x8xf32>
    %cst_54 = arith.constant dense<0xFF800000> : vector<4x8xf32>
    %108 = vector.multi_reduction <maximumf>, %107, %cst_54 [2] : vector<4x8x8xf32> to vector<4x8xf32>
    %109 = vector.shape_cast %108 : vector<4x8xf32> to vector<4x8x1xf32>
    %110 = vector.broadcast %109 : vector<4x8x1xf32> to vector<4x8x8xf32>
    %111 = arith.subf %107, %110 : vector<4x8x8xf32>
    %112 = math.exp %111 : vector<4x8x8xf32>
    %cst_55 = arith.constant dense<0.000000e+00> : vector<4x8xf32>
    %113 = vector.multi_reduction <add>, %112, %cst_55 [2] : vector<4x8x8xf32> to vector<4x8xf32>
    %114 = vector.shape_cast %113 : vector<4x8xf32> to vector<4x8x1xf32>
    %115 = tpu.reciprocal %114 {approx = true} : vector<4x8x1xf32> -> vector<4x8x1xf32>
    %116 = vector.broadcast %115 : vector<4x8x1xf32> to vector<4x8x8xf32>
    %117 = arith.mulf %112, %116 : vector<4x8x8xf32>
    %118 = arith.truncf %117 : vector<4x8x8xf32> to vector<4x8x8xbf16>
    "tpu.trace_start"() <{level = 10 : i32, message = "bqk,bkd->bqd"}> : () -> ()
    %cst_56 = arith.constant dense<0.000000e+00> : vector<4x8x8xf32>
    %119 = tpu.matmul %118, %103, %cst_56 {dimension_numbers = #tpu.dot_dimension_numbers<[2], [1], [1], [2], [0, 0, 0, 1, 1, 2], [0], [0]>} : vector<4x8x8xbf16>, vector<4x8x8xbf16>, vector<4x8x8xf32> -> vector<4x8x8xf32>
    "tpu.trace_stop"() : () -> ()
    %120 = vector.shape_cast %119 : vector<4x8x8xf32> to vector<32x8xf32>
    %121 = arith.truncf %120 : vector<32x8xf32> to vector<32x8xbf16>
    %c3_57 = arith.constant 3 : index
    %c0_58 = arith.constant 0 : index
    %c0_59 = arith.constant 0 : index
    %122 = vector.load %arg8[%c3_57, %c0_58, %c0_59] : memref<4x8x32xbf16, #tpu.memory_space<vmem>>, vector<1x8x32xbf16>
    %123 = vector.shape_cast %122 : vector<1x8x32xbf16> to vector<8x32xbf16>
    %cst_60 = arith.constant dense<0.000000e+00> : vector<32x32xf32>
    %124 = tpu.matmul %121, %123, %cst_60 {dimension_numbers = #tpu.dot_dimension_numbers<[1], [0], [0], [1], [0, 0, 1, 1], [], []>} : vector<32x8xbf16>, vector<8x32xbf16>, vector<32x32xf32> -> vector<32x32xf32>
    %125 = arith.addf %97, %124 : vector<32x32xf32>
    %126 = vector.broadcast %12 : vector<1x32xf32> to vector<32x32xf32>
    %127 = arith.addf %125, %126 : vector<32x32xf32>
    %c0_61 = arith.constant 0 : index
    %c0_62 = arith.constant 0 : index
    %128 = vector.load %arg10[%c0_61, %c0_62] : memref<32x32xf32, #tpu.memory_space<vmem>>, vector<32x32xf32>
    tpu.vector_store %arg10[%c0_61, %c0_62], %127 {strides = array<i32>} : memref<32x32xf32, #tpu.memory_space<vmem>>, vector<32x32xf32>,
    return
  }
  func.func @transform_0(%arg0: i32) -> (i32, i32, i32, i32) {
    %c0_i32 = arith.constant 0 : i32
    %c0_i32_0 = arith.constant 0 : i32
    %c0_i32_1 = arith.constant 0 : i32
    %c0_i32_2 = arith.constant 0 : i32
    return %c0_i32, %arg0, %c0_i32_0, %c0_i32_1 : i32, i32, i32, i32
  }
  func.func @transform_1(%arg0: i32) -> (i32, i32) {
    %c0_i32 = arith.constant 0 : i32
    %c0_i32_0 = arith.constant 0 : i32
    return %arg0, %c0_i32 : i32, i32
  }
  func.func @transform_2(%arg0: i32) -> (i32, i32) {
    %c0_i32 = arith.constant 0 : i32
    %c0_i32_0 = arith.constant 0 : i32
    return %arg0, %c0_i32 : i32, i32
  }
  func.func @transform_3(%arg0: i32) -> (i32, i32) {
    %c0_i32 = arith.constant 0 : i32
    %c0_i32_0 = arith.constant 0 : i32
    return %arg0, %c0_i32 : i32, i32
  }
  func.func @transform_4(%arg0: i32) -> (i32, i32) {
    %c0_i32 = arith.constant 0 : i32
    %c0_i32_0 = arith.constant 0 : i32
    %c0_i32_1 = arith.constant 0 : i32
    return %c0_i32, %c0_i32_0 : i32, i32
  }
  func.func @transform_5(%arg0: i32) -> (i32, i32) {
    %c0_i32 = arith.constant 0 : i32
    %c0_i32_0 = arith.constant 0 : i32
    %c0_i32_1 = arith.constant 0 : i32
    return %c0_i32, %c0_i32_0 : i32, i32
  }
  func.func @transform_6(%arg0: i32) -> (i32, i32) {
    %c0_i32 = arith.constant 0 : i32
    %c0_i32_0 = arith.constant 0 : i32
    %c0_i32_1 = arith.constant 0 : i32
    return %c0_i32, %c0_i32_0 : i32, i32
  }
  func.func @transform_7(%arg0: i32) -> (i32, i32, i32) {
    %c0_i32 = arith.constant 0 : i32
    %c0_i32_0 = arith.constant 0 : i32
    %c0_i32_1 = arith.constant 0 : i32
    %c0_i32_2 = arith.constant 0 : i32
    return %c0_i32, %c0_i32_0, %c0_i32_1 : i32, i32, i32
  }
  func.func @transform_8(%arg0: i32) -> (i32, i32) {
    %c0_i32 = arith.constant 0 : i32
    %c0_i32_0 = arith.constant 0 : i32
    %c0_i32_1 = arith.constant 0 : i32
    return %c0_i32, %c0_i32_0 : i32, i32
  }
  func.func @transform_9(%arg0: i32) -> (i32, i32) {
    %c0_i32 = arith.constant 0 : i32
    %c0_i32_0 = arith.constant 0 : i32
    return %arg0, %c0_i32 : i32, i32
  }
}

</mosaic_0001>

<llo_original>
// kernel: tpu_custom_call.1
$region0: #{tpu_custom_call.1}
  #allocation0 [shape = 'u32[]', space=smem, size = 0x4, offset = 0x4, fixed_abs, tag = 'smem constant byte address 0x4 - core index']
  #allocation1 [shape = 'u32[144,128]{1,0:T(1,128)}', space=vmem, size = 0x12000, scoped, tag = 'internal scratch']
  #allocation4 [shape = 's32[]', space=sflag, size = 0x4, offset = 0, fixed_abs, tag = 'sflag constant byte address 0x0 - dummy sync flag']
  %s0 = inlined_call_operand.hbm [shape: f32[4,8,8,8], index: 0, kind: input, shape index: {}]
  %s1 = inlined_call_operand.vmem [shape: bf16[64,32], index: 1, kind: input, shape index: {}]
  %s2 = inlined_call_operand.vmem [shape: bf16[64,32], index: 2, kind: input, shape index: {}]
  %s3 = inlined_call_operand.vmem [shape: bf16[64,32], index: 3, kind: input, shape index: {}]
  %s4 = inlined_call_operand.vmem [shape: bf16[32,32], index: 4, kind: input, shape index: {}]
  %s5 = inlined_call_operand.vmem [shape: bf16[32,32], index: 5, kind: input, shape index: {}]
  %s6 = inlined_call_operand.vmem [shape: bf16[32,32], index: 6, kind: input, shape index: {}]
  %s7 = inlined_call_operand.vmem [shape: bf16[4,8,32], index: 7, kind: input, shape index: {}]
  %s8 = inlined_call_operand.vmem [shape: f32[1,32], index: 8, kind: input, shape index: {}]
  %s9 = inlined_call_operand.vmem [shape: f32[64,32], index: 9, kind: output, shape index: {}]
  %s10 = sld [smem:[#allocation0]]
  $region73: #{tpu_custom_call.1} parent=0
    _
  %s12 = ssub.s32 1, %s10
  %s13 = scalar_select 0, %s12, %s10
  $region1: #{tpu_custom_call.1} parent=0
    #allocation2 [shape = 'u8[131072]{0}', space=vmem, size = 0x20000, scoped, tag = 'input window, operand 0']
    #allocation3 [shape = 's32[2]{0}', space=sflag, size = 0x8, scoped, tag = 'scoped memory for tpu_custom_call.1']
    %14 = vsyncpa [#allocation3], 0
    %s15 = scalar_lea.sflag [#allocation3], 1
    %16 = vsyncpa %s15, 0
    loop: start=0, step=1, limit=4
    $region2: #{tpu_custom_call.1} parent=1 // loop_pre_header
      _
    $region3: #{tpu_custom_call.1} parent=1 // loop_header
      %s18 = sphi 0, %s22
      %p19 = scmp.ge.s32.totalorder %s18, 4
      %s28 = sphi 0, %s30
      %s31 = sphi 0, %s28
      %s32 = sphi 0, %s31
      %s48 = sphi 0, %s32
      %s54 = sphi 0, %s56
      %s57 = sphi 0, %s54
      %s58 = sphi 0, %s57
      %s74 = sphi 0, %s58
      %s80 = sphi 0, %s82
      %s83 = sphi 0, %s80
      %s84 = sphi 0, %s83
      %s100 = sphi 0, %s84
      %s106 = sphi 0, %s108
      %s109 = sphi 0, %s106
      %s110 = sphi 0, %s109
      %s126 = sphi 0, %s110
      %s130 = sphi 0, %s130
      %s132 = sphi 0, %s130
      %s133 = sphi 0, %s132
      %s147 = sphi 0, %s133
      %s151 = sphi 0, %s151
      %s153 = sphi 0, %s151
      %s154 = sphi 0, %s153
      %s168 = sphi 0, %s154
      %s172 = sphi 0, %s172
      %s174 = sphi 0, %s172
      %s175 = sphi 0, %s174
      %s189 = sphi 0, %s175
      %s193 = sphi 0, %s193
      %s195 = sphi 0, %s193
      %s196 = sphi 0, %s195
      %s210 = sphi 0, %s196
      %s214 = sphi 0, %s214
      %s216 = sphi 0, %s214
      %s217 = sphi 0, %s216
      %s231 = sphi 0, %s217
      %s237 = sphi 0, %s239
      %s240 = sphi 0, %s237
      %s241 = sphi 0, %s240
      %s257 = sphi 0, %s241
    $region4: #{tpu_custom_call.1} parent=1 // loop_header_branch
      %21 = sbr.rel (%p19) target = $region8
    $region5: #{tpu_custom_call.1} parent=1 // loop_body
      %s23 = ssub.s32 %s18, 1
      %s24 = ssub.s32 %s18, 2
      %s25 = sadd.s32 %s18, 1
      %s26 = ssub.s32 %s18, %s25
      %p27 = scmp.eq.s32.totalorder %s26, 0
      %s29 = sadd.s32 %s28, 1
      %s30 = scalar_select %p27, %s28, %s29
      %p33 = pneg %p27
      %p34 = scmp.eq.s32.totalorder %s18, 1
      %p35 = por %p33, %p34
      %p36 = scmp.ne.s32.totalorder %s28, %s31
      %p37 = scmp.eq.s32.totalorder %s18, 0
      %p38 = por %p36, %p37
      %p39 = scmp.ne.s32.totalorder %s28, %s31
      %p40 = scmp.eq.s32.totalorder %s23, 1
      %p41 = por %p39, %p40
      %p42 = scmp.ne.s32.totalorder %s31, %s32
      %p43 = scmp.eq.s32.totalorder %s23, 0
      %p44 = por %p42, %p43
      %p45 = scmp.ne.s32.totalorder %s31, %s32
      %p46 = scmp.eq.s32.totalorder %s24, 1
      %p47 = por %p45, %p46
      %p49 = scmp.ne.s32.totalorder %s32, %s48
      %p50 = scmp.eq.s32.totalorder %s24, 0
      %p51 = por %p49, %p50
      %s52 = ssub.s32 %s18, %s25
      %p53 = scmp.eq.s32.totalorder %s52, 0
      %s55 = sadd.s32 %s54, 1
      %s56 = scalar_select %p53, %s54, %s55
      %p59 = pneg %p53
      %p60 = scmp.eq.s32.totalorder %s18, 1
      %p61 = por %p59, %p60
      %p62 = scmp.ne.s32.totalorder %s54, %s57
      %p63 = scmp.eq.s32.totalorder %s18, 0
      %p64 = por %p62, %p63
      %p65 = scmp.ne.s32.totalorder %s54, %s57
      %p66 = scmp.eq.s32.totalorder %s23, 1
      %p67 = por %p65, %p66
      %p68 = scmp.ne.s32.totalorder %s57, %s58
      %p69 = scmp.eq.s32.totalorder %s23, 0
      %p70 = por %p68, %p69
      %p71 = scmp.ne.s32.totalorder %s57, %s58
      %p72 = scmp.eq.s32.totalorder %s24, 1
      %p73 = por %p71, %p72
      %p75 = scmp.ne.s32.totalorder %s58, %s74
      %p76 = scmp.eq.s32.totalorder %s24, 0
      %p77 = por %p75, %p76
      %s78 = ssub.s32 %s18, %s25
      %p79 = scmp.eq.s32.totalorder %s78, 0
      %s81 = sadd.s32 %s80, 1
      %s82 = scalar_select %p79, %s80, %s81
      %p85 = pneg %p79
      %p86 = scmp.eq.s32.totalorder %s18, 1
      %p87 = por %p85, %p86
      %p88 = scmp.ne.s32.totalorder %s80, %s83
      %p89 = scmp.eq.s32.totalorder %s18, 0
      %p90 = por %p88, %p89
      %p91 = scmp.ne.s32.totalorder %s80, %s83
      %p92 = scmp.eq.s32.totalorder %s23, 1
      %p93 = por %p91, %p92
      %p94 = scmp.ne.s32.totalorder %s83, %s84
      %p95 = scmp.eq.s32.totalorder %s23, 0
      %p96 = por %p94, %p95
      %p97 = scmp.ne.s32.totalorder %s83, %s84
      %p98 = scmp.eq.s32.totalorder %s24, 1
      %p99 = por %p97, %p98
      %p101 = scmp.ne.s32.totalorder %s84, %s100
      %p102 = scmp.eq.s32.totalorder %s24, 0
      %p103 = por %p101, %p102
      %s104 = ssub.s32 %s18, %s25
      %p105 = scmp.eq.s32.totalorder %s104, 0
      %s107 = sadd.s32 %s106, 1
      %s108 = scalar_select %p105, %s106, %s107
      %p111 = pneg %p105
      %p112 = scmp.eq.s32.totalorder %s18, 1
      %p113 = por %p111, %p112
      %p114 = scmp.ne.s32.totalorder %s106, %s109
      %p115 = scmp.eq.s32.totalorder %s18, 0
      %p116 = por %p114, %p115
      %p117 = scmp.ne.s32.totalorder %s106, %s109
      %p118 = scmp.eq.s32.totalorder %s23, 1
      %p119 = por %p117, %p118
      %p120 = scmp.ne.s32.totalorder %s109, %s110
      %p121 = scmp.eq.s32.totalorder %s23, 0
      %p122 = por %p120, %p121
      %p123 = scmp.ne.s32.totalorder %s109, %s110
      %p124 = scmp.eq.s32.totalorder %s24, 1
      %p125 = por %p123, %p124
      %p127 = scmp.ne.s32.totalorder %s110, %s126
      %p128 = scmp.eq.s32.totalorder %s24, 0
      %p129 = por %p127, %p128
      %s131 = sadd.s32 %s130, 1
      %p134 = scmp.eq.s32.totalorder %s18, 1
      %p135 = scmp.ne.s32.totalorder %s130, %s132
      %p136 = scmp.eq.s32.totalorder %s18, 0
      %p137 = por %p135, %p136
      %p138 = scmp.ne.s32.totalorder %s130, %s132
      %p139 = scmp.eq.s32.totalorder %s23, 1
      %p140 = por %p138, %p139
      %p141 = scmp.ne.s32.totalorder %s132, %s133
      %p142 = scmp.eq.s32.totalorder %s23, 0
      %p143 = por %p141, %p142
      %p144 = scmp.ne.s32.totalorder %s132, %s133
      %p145 = scmp.eq.s32.totalorder %s24, 1
      %p146 = por %p144, %p145
      %p148 = scmp.ne.s32.totalorder %s133, %s147
      %p149 = scmp.eq.s32.totalorder %s24, 0
      %p150 = por %p148, %p149
      %s152 = sadd.s32 %s151, 1
      %p155 = scmp.eq.s32.totalorder %s18, 1
      %p156 = scmp.ne.s32.totalorder %s151, %s153
      %p157 = scmp.eq.s32.totalorder %s18, 0
      %p158 = por %p156, %p157
      %p159 = scmp.ne.s32.totalorder %s151, %s153
      %p160 = scmp.eq.s32.totalorder %s23, 1
      %p161 = por %p159, %p160
      %p162 = scmp.ne.s32.totalorder %s153, %s154
      %p163 = scmp.eq.s32.totalorder %s23, 0
      %p164 = por %p162, %p163
      %p165 = scmp.ne.s32.totalorder %s153, %s154
      %p166 = scmp.eq.s32.totalorder %s24, 1
      %p167 = por %p165, %p166
      %p169 = scmp.ne.s32.totalorder %s154, %s168
      %p170 = scmp.eq.s32.totalorder %s24, 0
      %p171 = por %p169, %p170
      %s173 = sadd.s32 %s172, 1
      %p176 = scmp.eq.s32.totalorder %s18, 1
      %p177 = scmp.ne.s32.totalorder %s172, %s174
      %p178 = scmp.eq.s32.totalorder %s18, 0
      %p179 = por %p177, %p178
      %p180 = scmp.ne.s32.totalorder %s172, %s174
      %p181 = scmp.eq.s32.totalorder %s23, 1
      %p182 = por %p180, %p181
      %p183 = scmp.ne.s32.totalorder %s174, %s175
      %p184 = scmp.eq.s32.totalorder %s23, 0
      %p185 = por %p183, %p184
      %p186 = scmp.ne.s32.totalorder %s174, %s175
      %p187 = scmp.eq.s32.totalorder %s24, 1
      %p188 = por %p186, %p187
      %p190 = scmp.ne.s32.totalorder %s175, %s189
      %p191 = scmp.eq.s32.totalorder %s24, 0
      %p192 = por %p190, %p191
      %s194 = sadd.s32 %s193, 1
      %p197 = scmp.eq.s32.totalorder %s18, 1
      %p198 = scmp.ne.s32.totalorder %s193, %s195
      %p199 = scmp.eq.s32.totalorder %s18, 0
      %p200 = por %p198, %p199
      %p201 = scmp.ne.s32.totalorder %s193, %s195
      %p202 = scmp.eq.s32.totalorder %s23, 1
      %p203 = por %p201, %p202
      %p204 = scmp.ne.s32.totalorder %s195, %s196
      %p205 = scmp.eq.s32.totalorder %s23, 0
      %p206 = por %p204, %p205
      %p207 = scmp.ne.s32.totalorder %s195, %s196
      %p208 = scmp.eq.s32.totalorder %s24, 1
      %p209 = por %p207, %p208
      %p211 = scmp.ne.s32.totalorder %s196, %s210
      %p212 = scmp.eq.s32.totalorder %s24, 0
      %p213 = por %p211, %p212
      %s215 = sadd.s32 %s214, 1
      %p218 = scmp.eq.s32.totalorder %s18, 1
      %p219 = scmp.ne.s32.totalorder %s214, %s216
      %p220 = scmp.eq.s32.totalorder %s18, 0
      %p221 = por %p219, %p220
      %p222 = scmp.ne.s32.totalorder %s214, %s216
      %p223 = scmp.eq.s32.totalorder %s23, 1
      %p224 = por %p222, %p223
      %p225 = scmp.ne.s32.totalorder %s216, %s217
      %p226 = scmp.eq.s32.totalorder %s23, 0
      %p227 = por %p225, %p226
      %p228 = scmp.ne.s32.totalorder %s216, %s217
      %p229 = scmp.eq.s32.totalorder %s24, 1
      %p230 = por %p228, %p229
      %p232 = scmp.ne.s32.totalorder %s217, %s231
      %p233 = scmp.eq.s32.totalorder %s24, 0
      %p234 = por %p232, %p233
      %s235 = ssub.s32 %s18, %s25
      %p236 = scmp.eq.s32.totalorder %s235, 0
      %s238 = sadd.s32 %s237, 1
      %s239 = scalar_select %p236, %s237, %s238
      %p242 = pneg %p236
      %p243 = scmp.eq.s32.totalorder %s18, 1
      %p244 = por %p242, %p243
      %p245 = scmp.ne.s32.totalorder %s237, %s240
      %p246 = scmp.eq.s32.totalorder %s18, 0
      %p247 = por %p245, %p246
      %p248 = scmp.ne.s32.totalorder %s237, %s240
      %p249 = scmp.eq.s32.totalorder %s23, 1
      %p250 = por %p248, %p249
      %p251 = scmp.ne.s32.totalorder %s240, %s241
      %p252 = scmp.eq.s32.totalorder %s23, 0
      %p253 = por %p251, %p252
      %p254 = scmp.ne.s32.totalorder %s240, %s241
      %p255 = scmp.eq.s32.totalorder %s24, 1
      %p256 = por %p254, %p255
      %p258 = scmp.ne.s32.totalorder %s241, %s257
      %p259 = scmp.eq.s32.totalorder %s24, 0
      %p260 = por %p258, %p259
      %p261 = scmp.le.s32.totalorder 1, %s18
      %p262 = scmp.lt.s32.totalorder %s18, 3
      %p263 = pnand %p261, %p262
      %p264 = pneg %p263
      // Predicated region
      $region9: #{tpu_custom_call.1} parent=5 // pred_check
        _
      $region10: #{tpu_custom_call.1} parent=5 // pred_check_branch
        %266 = sbr.rel (%p263) target = $region12
      $region11: #{tpu_custom_call.1} parent=5 // pred_region
        %s267 = ssub.s32 %s18, 1
        // Predicated region
        $region13: #{tpu_custom_call.1} parent=11 // pred_check
          %p268 = pneg %p143
        $region14: #{tpu_custom_call.1} parent=11 // pred_check_branch
          %270 = sbr.rel (%p268) target = $region16
        $region15: #{tpu_custom_call.1} parent=11 // pred_region
          _
        $region16: #{tpu_custom_call.1} parent=11 // pred_fallthru
          _
        // Predicated region
        $region17: #{tpu_custom_call.1} parent=11 // pred_check
          %p271 = pneg %p164
        $region18: #{tpu_custom_call.1} parent=11 // pred_check_branch
          %273 = sbr.rel (%p271) target = $region20
        $region19: #{tpu_custom_call.1} parent=11 // pred_region
          _
        $region20: #{tpu_custom_call.1} parent=11 // pred_fallthru
          _
        // Predicated region
        $region21: #{tpu_custom_call.1} parent=11 // pred_check
          %p274 = pneg %p185
        $region22: #{tpu_custom_call.1} parent=11 // pred_check_branch
          %276 = sbr.rel (%p274) target = $region24
        $region23: #{tpu_custom_call.1} parent=11 // pred_region
          _
        $region24: #{tpu_custom_call.1} parent=11 // pred_fallthru
          _
        // Predicated region
        $region25: #{tpu_custom_call.1} parent=11 // pred_check
          %p277 = pneg %p206
        $region26: #{tpu_custom_call.1} parent=11 // pred_check_branch
          %279 = sbr.rel (%p277) target = $region28
        $region27: #{tpu_custom_call.1} parent=11 // pred_region
          _
        $region28: #{tpu_custom_call.1} parent=11 // pred_fallthru
          _
        // Predicated region
        $region29: #{tpu_custom_call.1} parent=11 // pred_check
          %p280 = pneg %p227
        $region30: #{tpu_custom_call.1} parent=11 // pred_check_branch
          %282 = sbr.rel (%p280) target = $region32
        $region31: #{tpu_custom_call.1} parent=11 // pred_region
          _
        $region32: #{tpu_custom_call.1} parent=11 // pred_fallthru
          _
      $region12: #{tpu_custom_call.1} parent=5 // pred_fallthru
        _
      %p283 = scmp.lt.s32.totalorder %s18, 2
      // Predicated region
      $region33: #{tpu_custom_call.1} parent=5 // pred_check
        %p284 = pneg %p283
      $region34: #{tpu_custom_call.1} parent=5 // pred_check_branch
        %286 = sbr.rel (%p284) target = $region36
      $region35: #{tpu_custom_call.1} parent=5 // pred_region
        // Predicated region
        $region37: #{tpu_custom_call.1} parent=35 // pred_check
          %p287 = pneg %p38
        $region38: #{tpu_custom_call.1} parent=35 // pred_check_branch
          %289 = sbr.rel (%p287) target = $region40
        $region39: #{tpu_custom_call.1} parent=35 // pred_region
          #allocation5 [shape = 'u32[6]{0}', space=smem, size = 0x18, scoped, tag = 'DMA stride descriptor']
          %s290 = sand.u32 %s28, 1
          %s291 = scalar_lea.sflag [#allocation3], %s290
          %s292 = sand.u32 %s28, 1
          %s293 = smul.addr %s292, 128
          %s294 = scalar_lea.vmem [#allocation2], %s293
          %s295 = smul.u32 4, %s18
          %s297 = ssub.s32 2048, 2048
          %298 = vsyncadd %s291, %s297
          %s299 = smul.addr %s295, 128
          %s300 = scalar_lea.hbm %s0, %s299
          %s302 = sshll.u32 1, 14
          %s303 = sxor.u32 4294967295, %s302
          %s305 = sld [smem:[#allocation0]]
          %s306 = sadd.s32 2, %s305
          %s308 = sshll.u32 7, 26
          %s309 = sxor.u32 4294967295, %s308
          %s310 = sand.u32 0, %s309
          %s311 = sshll.u32 %s306, 26
          %s312 = sor.u32 %s310, %s311
          %s313 = sshll.u32 %s294, 4
          %s314 = int_to_ptr.vmem [resolvable:$true] %s313
          %320 = sst [smem:[#allocation5]] 1024
          %s321 = scalar_lea.smem [#allocation5], 1
          %322 = sst [smem:[%s321]] 512
          %s323 = scalar_lea.smem [#allocation5], 2
          %324 = sst [smem:[%s323]] 4
          %s325 = scalar_lea.smem [#allocation5], 3
          %326 = sst [smem:[%s325]] 128
          %s327 = scalar_lea.smem [#allocation5], 4
          %328 = sst [smem:[%s327]] 128
          %s329 = scalar_lea.smem [#allocation5], 5
          %330 = sst [smem:[%s329]] 8
          %332 = dma.general %s300, 2048, %s314, %s291, [#allocation4], [#allocation5], %s312, 0
        $region40: #{tpu_custom_call.1} parent=35 // pred_fallthru
          _
        // Predicated region
        $region41: #{tpu_custom_call.1} parent=35 // pred_check
          %p333 = pneg %p64
        $region42: #{tpu_custom_call.1} parent=35 // pred_check_branch
          %335 = sbr.rel (%p333) target = $region44
        $region43: #{tpu_custom_call.1} parent=35 // pred_region
          %s336 = smul.u32 4, %s18
          %p337 = scmp.lt.s32.totalorder %s336, 7
          %s338 = scalar_select %p337, %s336, 7
          %s339 = smul.addr %s338, 4
          %s340 = scalar_lea.vmem %s1, %s339
          %s341 = smul.u32 4, %s18
        $region44: #{tpu_custom_call.1} parent=35 // pred_fallthru
          _
        // Predicated region
        $region45: #{tpu_custom_call.1} parent=35 // pred_check
          %p342 = pneg %p90
        $region46: #{tpu_custom_call.1} parent=35 // pred_check_branch
          %344 = sbr.rel (%p342) target = $region48
        $region47: #{tpu_custom_call.1} parent=35 // pred_region
          %s345 = smul.u32 4, %s18
          %p346 = scmp.lt.s32.totalorder %s345, 7
          %s347 = scalar_select %p346, %s345, 7
          %s348 = smul.addr %s347, 4
          %s349 = scalar_lea.vmem %s2, %s348
          %s350 = smul.u32 4, %s18
        $region48: #{tpu_custom_call.1} parent=35 // pred_fallthru
          _
        // Predicated region
        $region49: #{tpu_custom_call.1} parent=35 // pred_check
          %p351 = pneg %p116
        $region50: #{tpu_custom_call.1} parent=35 // pred_check_branch
          %353 = sbr.rel (%p351) target = $region52
        $region51: #{tpu_custom_call.1} parent=35 // pred_region
          %s354 = smul.u32 4, %s18
          %p355 = scmp.lt.s32.totalorder %s354, 7
          %s356 = scalar_select %p355, %s354, 7
          %s357 = smul.addr %s356, 4
          %s358 = scalar_lea.vmem %s3, %s357
          %s359 = smul.u32 4, %s18
        $region52: #{tpu_custom_call.1} parent=35 // pred_fallthru
          _
      $region36: #{tpu_custom_call.1} parent=5 // pred_fallthru
        _
      %p360 = scmp.le.s32.totalorder 1, %s18
      %p361 = scmp.lt.s32.totalorder %s18, 3
      %p362 = pnand %p360, %p361
      %p363 = pneg %p362
      // Predicated region
      $region53: #{tpu_custom_call.1} parent=5 // pred_check
        _
      $region54: #{tpu_custom_call.1} parent=5 // pred_check_branch
        %365 = sbr.rel (%p362) target = $region56
      $region55: #{tpu_custom_call.1} parent=5 // pred_region
        %s366 = ssub.s32 %s18, 1
        %s367 = sand.u32 %s31, 1
        %s368 = scalar_lea.sflag [#allocation3], %s367
        %s369 = sand.u32 %s31, 1
        %s370 = smul.addr %s369, 128
        %s371 = scalar_lea.vmem [#allocation2], %s370
        // Predicated region
        $region57: #{tpu_custom_call.1} parent=55 // pred_check
          %p372 = pneg %p44
        $region58: #{tpu_custom_call.1} parent=55 // pred_check_branch
          %374 = sbr.rel (%p372) target = $region60
        $region59: #{tpu_custom_call.1} parent=55 // pred_region
          %375 = dma.done %s368, 2048
        $region60: #{tpu_custom_call.1} parent=55 // pred_fallthru
          _
        %s376 = sand.u32 %s31, 1
        %s377 = scalar_lea.sflag [#allocation3], %s376
        %s378 = sand.u32 %s31, 1
        %s379 = smul.addr %s378, 128
        %s380 = scalar_lea.vmem [#allocation2], %s379
        %p381 = pneg %p44
        %p382 = pneg %p41
        %s383 = smul.u32 4, %s23
        %p384 = scmp.lt.s32.totalorder %s383, 7
        %s385 = scalar_select %p384, %s383, 7
        %s386 = smul.addr %s385, 4
        %s387 = scalar_lea.vmem %s1, %s386
        %p388 = pneg %p70
        %p389 = pneg %p67
        %s390 = smul.u32 4, %s23
        %p391 = scmp.lt.s32.totalorder %s390, 7
        %s392 = scalar_select %p391, %s390, 7
        %s393 = smul.addr %s392, 4
        %s394 = scalar_lea.vmem %s2, %s393
        %p395 = pneg %p96
        %p396 = pneg %p93
        %s397 = smul.u32 4, %s23
        %p398 = scmp.lt.s32.totalorder %s397, 7
        %s399 = scalar_select %p398, %s397, 7
        %s400 = smul.addr %s399, 4
        %s401 = scalar_lea.vmem %s3, %s400
        %p402 = pneg %p122
        %p403 = pneg %p119
        %p404 = pneg %p143
        %p405 = pneg %p140
        %p406 = pneg %p164
        %p407 = pneg %p161
        %p408 = pneg %p185
        %p409 = pneg %p182
        %p410 = pneg %p206
        %p411 = pneg %p203
        %p412 = pneg %p227
        %p413 = pneg %p224
        %p414 = pneg %p253
        %p415 = pneg %p250
        %s416 = smul.u32 4, %s23
        %p417 = scmp.lt.s32.totalorder %s416, 7
        %s418 = scalar_select %p417, %s416, 7
        %s419 = smul.addr %s418, 8
        %s420 = scalar_lea.vmem %s9, %s419
        %s421 = smul.u32 4, %s23
        %s422 = smul.u32 4, %s23
        %p423 = scmp.lt.s32.totalorder %s422, 7
        %s424 = scalar_select %p423, %s422, 7
        %s425 = smul.addr %s424, 4
        %s426 = scalar_lea.vmem %s1, %s425
        %s427 = smul.u32 4, %s23
        %s428 = smul.u32 4, %s23
        %p429 = scmp.lt.s32.totalorder %s428, 7
        %s430 = scalar_select %p429, %s428, 7
        %s431 = smul.addr %s430, 4
        %s432 = scalar_lea.vmem %s2, %s431
        %s433 = smul.u32 4, %s23
        %s434 = smul.u32 4, %s23
        %p435 = scmp.lt.s32.totalorder %s434, 7
        %s436 = scalar_select %p435, %s434, 7
        %s437 = smul.addr %s436, 4
        %s438 = scalar_lea.vmem %s3, %s437
        %s439 = smul.u32 4, %s23
        %s440 = smul.u32 4, %s23
        %p441 = scmp.lt.s32.totalorder %s440, 7
        %s442 = scalar_select %p441, %s440, 7
        %s443 = smul.addr %s442, 8
        %s444 = scalar_lea.vmem %s9, %s443
        %s445 = smul.u32 4, %s23
        %v447 = vld [vmem:[%s426] sm:$0xf]
        %v448 = vld [vmem:[%s426 + $0x4] sm:$0xf]
        %v449 = vld [vmem:[%s426 + $0x8] sm:$0xf]
        %v450 = vld [vmem:[%s426 + $0xc] sm:$0xf]
        %v451 = vld [vmem:[%s432] sm:$0xf]
        %v452 = vld [vmem:[%s432 + $0x4] sm:$0xf]
        %v453 = vld [vmem:[%s432 + $0x8] sm:$0xf]
        %v454 = vld [vmem:[%s432 + $0xc] sm:$0xf]
        %v455 = vld [vmem:[%s438] sm:$0xf]
        %v456 = vld [vmem:[%s438 + $0x4] sm:$0xf]
        %v457 = vld [vmem:[%s438 + $0x8] sm:$0xf]
        %v458 = vld [vmem:[%s438 + $0xc] sm:$0xf]
        %v459 = vld [vmem:[%s4] sm:$0xf]
        %v460 = vld [vmem:[%s4 + $0x4] sm:$0xf]
        %v461 = vld [vmem:[%s4 + $0x8] sm:$0xf]
        %v462 = vld [vmem:[%s4 + $0xc] sm:$0xf]
        %v467 = vunpack.c.l.b16 %v447
        %v468 = vunpack.c.l.b16 %v448
        %v469 = vunpack.c.l.b16 %v449
        %v470 = vunpack.c.l.b16 %v450
        %v471 = vpack.c.b16 %v468, %v467
        %v472 = vpack.c.b16 %v470, %v469
        %v477 = vunpack.c.l.b16 %v459
        %v478 = vunpack.c.l.b16 %v460
        %v479 = vunpack.c.l.b16 %v461
        %v480 = vunpack.c.l.b16 %v462
        %v481 = vpack.c.b16 %v478, %v477
        %v482 = vpack.c.b16 %v480, %v479
        %vm485 = vcmask 261120
        %v487 = vsel %vm485, %v471, 0
        %v490 = vsel %vm485, %v472, 0
        %492 = vmatprep.subr.bf16.mxu0 0
        %493 = vmatpush1.bf16.msra.mxu0 %v481
        %494 = vmatprep.subr.bf16.mxu0 0
        %495 = vmatpush1.bf16.msra.mxu0 %v482
        %496 = vmatprep.subr.bf16.mxu0 0
        %497 = vmatpush1.bf16.msra.mxu0 0
        %498 = vmatprep.subr.bf16.mxu0 0
        %499 = vmatpush1.bf16.msra.mxu0 0
        %500 = vmatprep.subr.bf16.mxu0 0
        %501 = vmatpush1.bf16.msra.mxu0 0
        %502 = vmatprep.subr.bf16.mxu0 0
        %503 = vmatpush1.bf16.msra.mxu0 0
        %504 = vmatprep.subr.bf16.mxu0 0
        %505 = vmatpush1.bf16.msra.mxu0 0
        %506 = vmatprep.subr.bf16.mxu0 0
        %507 = vmatpush1.bf16.msra.mxu0 0
        %508 = vmatprep.subr.bf16.mxu0 0
        %509 = vmatpush1.bf16.msra.mxu0 0
        %510 = vmatprep.subr.bf16.mxu0 0
        %511 = vmatpush1.bf16.msra.mxu0 0
        %512 = vmatprep.subr.bf16.mxu0 0
        %513 = vmatpush1.bf16.msra.mxu0 0
        %514 = vmatprep.subr.bf16.mxu0 0
        %515 = vmatpush1.bf16.msra.mxu0 0
        %516 = vmatprep.subr.bf16.mxu0 0
        %517 = vmatpush1.bf16.msra.mxu0 0
        %518 = vmatprep.subr.bf16.mxu0 0
        %519 = vmatpush1.bf16.msra.mxu0 0
        %520 = vmatprep.subr.bf16.mxu0 0
        %521 = vmatpush1.bf16.msra.mxu0 0
        %522 = vmatprep.subr.bf16.mxu0 0
        %523 = vmatpush1.bf16.msra.mxu0 0
        %524 = vmatprep.mubr.bf16.mxu0 0
        %525 = vmatmul.mubr.bf16.gmra.mrb[0].mxu0 %v487
        %v526 = vpop.f32.mrb[0].mxu0
        %v527 = vadd.f32 0.0, %v526
        %v528 = vpop.f32.mrb[0].mxu0
        %v529 = vpop.f32.mrb[0].mxu0
        %v530 = vadd.f32 0.0, %v529
        %v531 = vpop.f32.mrb[0].mxu0
        %532 = vmatprep.mubr.bf16.mxu0 0
        %533 = vmatmul.mubr.bf16.gmra.mrb[0].mxu0 %v490
        %v534 = vpop.f32.mrb[0].mxu0
        %v535 = vadd.f32 0.0, %v534
        %v536 = vpop.f32.mrb[0].mxu0
        %v537 = vpop.f32.mrb[0].mxu0
        %v538 = vadd.f32 0.0, %v537
        %v539 = vpop.f32.mrb[0].mxu0
        %540 = vdwg.mxu0
        %v541 = vpack.c.bf16 %v530, %v527
        %v542 = vpack.c.bf16 %v538, %v535
        %v543 = vld [vmem:[%s5] sm:$0xf]
        %v544 = vld [vmem:[%s5 + $0x4] sm:$0xf]
        %v545 = vld [vmem:[%s5 + $0x8] sm:$0xf]
        %v546 = vld [vmem:[%s5 + $0xc] sm:$0xf]
        %v551 = vunpack.c.l.b16 %v451
        %v552 = vunpack.c.l.b16 %v452
        %v553 = vunpack.c.l.b16 %v453
        %v554 = vunpack.c.l.b16 %v454
        %v555 = vpack.c.b16 %v552, %v551
        %v556 = vpack.c.b16 %v554, %v553
        %v561 = vunpack.c.l.b16 %v543
        %v562 = vunpack.c.l.b16 %v544
        %v563 = vunpack.c.l.b16 %v545
        %v564 = vunpack.c.l.b16 %v546
        %v565 = vpack.c.b16 %v562, %v561
        %v566 = vpack.c.b16 %v564, %v563
        %v570 = vsel %vm485, %v555, 0
        %v573 = vsel %vm485, %v556, 0
        %575 = vmatprep.subr.bf16.mxu0 0
        %576 = vmatpush1.bf16.msra.mxu0 %v565
        %577 = vmatprep.subr.bf16.mxu0 0
        %578 = vmatpush1.bf16.msra.mxu0 %v566
        %579 = vmatprep.subr.bf16.mxu0 0
        %580 = vmatpush1.bf16.msra.mxu0 0
        %581 = vmatprep.subr.bf16.mxu0 0
        %582 = vmatpush1.bf16.msra.mxu0 0
        %583 = vmatprep.subr.bf16.mxu0 0
        %584 = vmatpush1.bf16.msra.mxu0 0
        %585 = vmatprep.subr.bf16.mxu0 0
        %586 = vmatpush1.bf16.msra.mxu0 0
        %587 = vmatprep.subr.bf16.mxu0 0
        %588 = vmatpush1.bf16.msra.mxu0 0
        %589 = vmatprep.subr.bf16.mxu0 0
        %590 = vmatpush1.bf16.msra.mxu0 0
        %591 = vmatprep.subr.bf16.mxu0 0
        %592 = vmatpush1.bf16.msra.mxu0 0
        %593 = vmatprep.subr.bf16.mxu0 0
        %594 = vmatpush1.bf16.msra.mxu0 0
        %595 = vmatprep.subr.bf16.mxu0 0
        %596 = vmatpush1.bf16.msra.mxu0 0
        %597 = vmatprep.subr.bf16.mxu0 0
        %598 = vmatpush1.bf16.msra.mxu0 0
        %599 = vmatprep.subr.bf16.mxu0 0
        %600 = vmatpush1.bf16.msra.mxu0 0
        %601 = vmatprep.subr.bf16.mxu0 0
        %602 = vmatpush1.bf16.msra.mxu0 0
        %603 = vmatprep.subr.bf16.mxu0 0
        %604 = vmatpush1.bf16.msra.mxu0 0
        %605 = vmatprep.subr.bf16.mxu0 0
        %606 = vmatpush1.bf16.msra.mxu0 0
        %607 = vmatprep.mubr.bf16.mxu0 0
        %608 = vmatmul.mubr.bf16.gmra.mrb[0].mxu0 %v570
        %v609 = vpop.f32.mrb[0].mxu0
        %v610 = vadd.f32 0.0, %v609
        %v611 = vpop.f32.mrb[0].mxu0
        %v612 = vpop.f32.mrb[0].mxu0
        %v613 = vadd.f32 0.0, %v612
        %v614 = vpop.f32.mrb[0].mxu0
        %615 = vmatprep.mubr.bf16.mxu0 0
        %616 = vmatmul.mubr.bf16.gmra.mrb[0].mxu0 %v573
        %v617 = vpop.f32.mrb[0].mxu0
        %v618 = vadd.f32 0.0, %v617
        %v619 = vpop.f32.mrb[0].mxu0
        %v620 = vpop.f32.mrb[0].mxu0
        %v621 = vadd.f32 0.0, %v620
        %v622 = vpop.f32.mrb[0].mxu0
        %623 = vdwg.mxu0
        %v624 = vpack.c.bf16 %v613, %v610
        %v625 = vpack.c.bf16 %v621, %v618
        %v626 = vld [vmem:[%s6] sm:$0xf]
        %v627 = vld [vmem:[%s6 + $0x4] sm:$0xf]
        %v628 = vld [vmem:[%s6 + $0x8] sm:$0xf]
        %v629 = vld [vmem:[%s6 + $0xc] sm:$0xf]
        %v634 = vunpack.c.l.b16 %v455
        %v635 = vunpack.c.l.b16 %v456
        %v636 = vunpack.c.l.b16 %v457
        %v637 = vunpack.c.l.b16 %v458
        %v638 = vpack.c.b16 %v635, %v634
        %v639 = vpack.c.b16 %v637, %v636
        %v644 = vunpack.c.l.b16 %v626
        %v645 = vunpack.c.l.b16 %v627
        %v646 = vunpack.c.l.b16 %v628
        %v647 = vunpack.c.l.b16 %v629
        %v648 = vpack.c.b16 %v645, %v644
        %v649 = vpack.c.b16 %v647, %v646
        %v653 = vsel %vm485, %v638, 0
        %v656 = vsel %vm485, %v639, 0
        %658 = vmatprep.subr.bf16.mxu0 0
        %659 = vmatpush1.bf16.msra.mxu0 %v648
        %660 = vmatprep.subr.bf16.mxu0 0
        %661 = vmatpush1.bf16.msra.mxu0 %v649
        %662 = vmatprep.subr.bf16.mxu0 0
        %663 = vmatpush1.bf16.msra.mxu0 0
        %664 = vmatprep.subr.bf16.mxu0 0
        %665 = vmatpush1.bf16.msra.mxu0 0
        %666 = vmatprep.subr.bf16.mxu0 0
        %667 = vmatpush1.bf16.msra.mxu0 0
        %668 = vmatprep.subr.bf16.mxu0 0
        %669 = vmatpush1.bf16.msra.mxu0 0
        %670 = vmatprep.subr.bf16.mxu0 0
        %671 = vmatpush1.bf16.msra.mxu0 0
        %672 = vmatprep.subr.bf16.mxu0 0
        %673 = vmatpush1.bf16.msra.mxu0 0
        %674 = vmatprep.subr.bf16.mxu0 0
        %675 = vmatpush1.bf16.msra.mxu0 0
        %676 = vmatprep.subr.bf16.mxu0 0
        %677 = vmatpush1.bf16.msra.mxu0 0
        %678 = vmatprep.subr.bf16.mxu0 0
        %679 = vmatpush1.bf16.msra.mxu0 0
        %680 = vmatprep.subr.bf16.mxu0 0
        %681 = vmatpush1.bf16.msra.mxu0 0
        %682 = vmatprep.subr.bf16.mxu0 0
        %683 = vmatpush1.bf16.msra.mxu0 0
        %684 = vmatprep.subr.bf16.mxu0 0
        %685 = vmatpush1.bf16.msra.mxu0 0
        %686 = vmatprep.subr.bf16.mxu0 0
        %687 = vmatpush1.bf16.msra.mxu0 0
        %688 = vmatprep.subr.bf16.mxu0 0
        %689 = vmatpush1.bf16.msra.mxu0 0
        %690 = vmatprep.mubr.bf16.mxu0 0
        %691 = vmatmul.mubr.bf16.gmra.mrb[0].mxu0 %v653
        %v692 = vpop.f32.mrb[0].mxu0
        %v693 = vadd.f32 0.0, %v692
        %v694 = vpop.f32.mrb[0].mxu0
        %v695 = vpop.f32.mrb[0].mxu0
        %v696 = vadd.f32 0.0, %v695
        %v697 = vpop.f32.mrb[0].mxu0
        %698 = vmatprep.mubr.bf16.mxu0 0
        %699 = vmatmul.mubr.bf16.gmra.mrb[0].mxu0 %v656
        %v700 = vpop.f32.mrb[0].mxu0
        %v701 = vadd.f32 0.0, %v700
        %v702 = vpop.f32.mrb[0].mxu0
        %v703 = vpop.f32.mrb[0].mxu0
        %v704 = vadd.f32 0.0, %v703
        %v705 = vpop.f32.mrb[0].mxu0
        %706 = vdwg.mxu0
        %v707 = vpack.c.bf16 %v696, %v693
        %v708 = vpack.c.bf16 %v704, %v701
        %v709 = vld [vmem:[%s8] sm:$0x1]
        %v712 = vunpack.c.l.b16 %v707
        %v713 = vunpack.c.h.b16 %v707
        %v714 = vunpack.c.l.b16 %v708
        %v715 = vunpack.c.h.b16 %v708
        %v716 = vpack.c.b16 %v712, %v712
        %v717 = vpack.c.b16 %v713, %v713
        %v718 = vpack.c.b16 %v714, %v714
        %v719 = vpack.c.b16 %v715, %v715
        %v722 = vunpack.c.l.b16 %v624
        %v723 = vunpack.c.h.b16 %v624
        %v724 = vunpack.c.l.b16 %v625
        %v725 = vunpack.c.h.b16 %v625
        %v726 = vpack.c.b16 %v722, %v722
        %v727 = vpack.c.b16 %v723, %v723
        %v728 = vpack.c.b16 %v724, %v724
        %v729 = vpack.c.b16 %v725, %v725
        %v732 = vunpack.c.l.b16 %v541
        %v733 = vunpack.c.h.b16 %v541
        %v734 = vunpack.c.l.b16 %v542
        %v735 = vunpack.c.h.b16 %v542
        %v736 = vpack.c.b16 %v732, %v732
        %v737 = vpack.c.b16 %v733, %v733
        %v738 = vpack.c.b16 %v734, %v734
        %v739 = vpack.c.b16 %v735, %v735
        %v740 = vld [vmem:[%s371] sm:$0xff]
        %v741 = vld [vmem:[%s371 + $0x8] sm:$0xff]
        %v742 = vld [vmem:[%s371 + $0x10] sm:$0xff]
        %v743 = vld [vmem:[%s371 + $0x18] sm:$0xff]
        %vm744 = vcmask 64512
        %v746 = vsel %vm744, %v716, 0
        %v749 = vsel %vm744, %v726, 0
        %751 = vmatprep.subr.bf16.mxu0 0
        %752 = vmatpush1.bf16.xpose.msra.mxu0 %v749
        %753 = vmatprep.subr.bf16.mxu0 0
        %754 = vmatpush1.bf16.xpose.msra.mxu0 0
        %755 = vmatprep.subr.bf16.mxu0 0
        %756 = vmatpush1.bf16.xpose.msra.mxu0 0
        %757 = vmatprep.subr.bf16.mxu0 0
        %758 = vmatpush1.bf16.xpose.msra.mxu0 0
        %759 = vmatprep.subr.bf16.mxu0 0
        %760 = vmatpush1.bf16.xpose.msra.mxu0 0
        %761 = vmatprep.subr.bf16.mxu0 0
        %762 = vmatpush1.bf16.xpose.msra.mxu0 0
        %763 = vmatprep.subr.bf16.mxu0 0
        %764 = vmatpush1.bf16.xpose.msra.mxu0 0
        %765 = vmatprep.subr.bf16.mxu0 0
        %766 = vmatpush1.bf16.xpose.msra.mxu0 0
        %767 = vmatprep.subr.bf16.mxu0 0
        %768 = vmatpush1.bf16.xpose.msra.mxu0 0
        %769 = vmatprep.subr.bf16.mxu0 0
        %770 = vmatpush1.bf16.xpose.msra.mxu0 0
        %771 = vmatprep.subr.bf16.mxu0 0
        %772 = vmatpush1.bf16.xpose.msra.mxu0 0
        %773 = vmatprep.subr.bf16.mxu0 0
        %774 = vmatpush1.bf16.xpose.msra.mxu0 0
        %775 = vmatprep.subr.bf16.mxu0 0
        %776 = vmatpush1.bf16.xpose.msra.mxu0 0
        %777 = vmatprep.subr.bf16.mxu0 0
        %778 = vmatpush1.bf16.xpose.msra.mxu0 0
        %779 = vmatprep.subr.bf16.mxu0 0
        %780 = vmatpush1.bf16.xpose.msra.mxu0 0
        %781 = vmatprep.subr.bf16.mxu0 0
        %782 = vmatpush1.bf16.xpose.msra.mxu0 0
        %783 = vmatprep.mubr.bf16.mxu0 0
        %784 = vmatmul.mubr.bf16.gmra.mrb[0].mxu0 %v746
        %v785 = vpop.f32.mrb[0].mxu0
        %v786 = vadd.f32 %v740, %v785
        %v787 = vpop.f32.mrb[0].mxu0
        %v788 = vpop.f32.mrb[0].mxu0
        %v789 = vpop.f32.mrb[0].mxu0
        %790 = vdwg.mxu0
        %v792 = vsel %vm744, %v717, 0
        %v795 = vsel %vm744, %v727, 0
        %797 = vmatprep.subr.bf16.mxu0 0
        %798 = vmatpush1.bf16.xpose.msra.mxu0 %v795
        %799 = vmatprep.subr.bf16.mxu0 0
        %800 = vmatpush1.bf16.xpose.msra.mxu0 0
        %801 = vmatprep.subr.bf16.mxu0 0
        %802 = vmatpush1.bf16.xpose.msra.mxu0 0
        %803 = vmatprep.subr.bf16.mxu0 0
        %804 = vmatpush1.bf16.xpose.msra.mxu0 0
        %805 = vmatprep.subr.bf16.mxu0 0
        %806 = vmatpush1.bf16.xpose.msra.mxu0 0
        %807 = vmatprep.subr.bf16.mxu0 0
        %808 = vmatpush1.bf16.xpose.msra.mxu0 0
        %809 = vmatprep.subr.bf16.mxu0 0
        %810 = vmatpush1.bf16.xpose.msra.mxu0 0
        %811 = vmatprep.subr.bf16.mxu0 0
        %812 = vmatpush1.bf16.xpose.msra.mxu0 0
        %813 = vmatprep.subr.bf16.mxu0 0
        %814 = vmatpush1.bf16.xpose.msra.mxu0 0
        %815 = vmatprep.subr.bf16.mxu0 0
        %816 = vmatpush1.bf16.xpose.msra.mxu0 0
        %817 = vmatprep.subr.bf16.mxu0 0
        %818 = vmatpush1.bf16.xpose.msra.mxu0 0
        %819 = vmatprep.subr.bf16.mxu0 0
        %820 = vmatpush1.bf16.xpose.msra.mxu0 0
        %821 = vmatprep.subr.bf16.mxu0 0
        %822 = vmatpush1.bf16.xpose.msra.mxu0 0
        %823 = vmatprep.subr.bf16.mxu0 0
        %824 = vmatpush1.bf16.xpose.msra.mxu0 0
        %825 = vmatprep.subr.bf16.mxu0 0
        %826 = vmatpush1.bf16.xpose.msra.mxu0 0
        %827 = vmatprep.subr.bf16.mxu0 0
        %828 = vmatpush1.bf16.xpose.msra.mxu0 0
        %829 = vmatprep.mubr.bf16.mxu0 0
        %830 = vmatmul.mubr.bf16.gmra.mrb[0].mxu0 %v792
        %v831 = vpop.f32.mrb[0].mxu0
        %v832 = vadd.f32 %v741, %v831
        %v833 = vpop.f32.mrb[0].mxu0
        %v834 = vpop.f32.mrb[0].mxu0
        %v835 = vpop.f32.mrb[0].mxu0
        %836 = vdwg.mxu0
        %v838 = vsel %vm744, %v718, 0
        %v841 = vsel %vm744, %v728, 0
        %843 = vmatprep.subr.bf16.mxu0 0
        %844 = vmatpush1.bf16.xpose.msra.mxu0 %v841
        %845 = vmatprep.subr.bf16.mxu0 0
        %846 = vmatpush1.bf16.xpose.msra.mxu0 0
        %847 = vmatprep.subr.bf16.mxu0 0
        %848 = vmatpush1.bf16.xpose.msra.mxu0 0
        %849 = vmatprep.subr.bf16.mxu0 0
        %850 = vmatpush1.bf16.xpose.msra.mxu0 0
        %851 = vmatprep.subr.bf16.mxu0 0
        %852 = vmatpush1.bf16.xpose.msra.mxu0 0
        %853 = vmatprep.subr.bf16.mxu0 0
        %854 = vmatpush1.bf16.xpose.msra.mxu0 0
        %855 = vmatprep.subr.bf16.mxu0 0
        %856 = vmatpush1.bf16.xpose.msra.mxu0 0
        %857 = vmatprep.subr.bf16.mxu0 0
        %858 = vmatpush1.bf16.xpose.msra.mxu0 0
        %859 = vmatprep.subr.bf16.mxu0 0
        %860 = vmatpush1.bf16.xpose.msra.mxu0 0
        %861 = vmatprep.subr.bf16.mxu0 0
        %862 = vmatpush1.bf16.xpose.msra.mxu0 0
        %863 = vmatprep.subr.bf16.mxu0 0
        %864 = vmatpush1.bf16.xpose.msra.mxu0 0
        %865 = vmatprep.subr.bf16.mxu0 0
        %866 = vmatpush1.bf16.xpose.msra.mxu0 0
        %867 = vmatprep.subr.bf16.mxu0 0
        %868 = vmatpush1.bf16.xpose.msra.mxu0 0
        %869 = vmatprep.subr.bf16.mxu0 0
        %870 = vmatpush1.bf16.xpose.msra.mxu0 0
        %871 = vmatprep.subr.bf16.mxu0 0
        %872 = vmatpush1.bf16.xpose.msra.mxu0 0
        %873 = vmatprep.subr.bf16.mxu0 0
        %874 = vmatpush1.bf16.xpose.msra.mxu0 0
        %875 = vmatprep.mubr.bf16.mxu0 0
        %876 = vmatmul.mubr.bf16.gmra.mrb[0].mxu0 %v838
        %v877 = vpop.f32.mrb[0].mxu0
        %v878 = vadd.f32 %v742, %v877
        %v879 = vpop.f32.mrb[0].mxu0
        %v880 = vpop.f32.mrb[0].mxu0
        %v881 = vpop.f32.mrb[0].mxu0
        %882 = vdwg.mxu0
        %v884 = vsel %vm744, %v719, 0
        %v887 = vsel %vm744, %v729, 0
        %889 = vmatprep.subr.bf16.mxu0 0
        %890 = vmatpush1.bf16.xpose.msra.mxu0 %v887
        %891 = vmatprep.subr.bf16.mxu0 0
        %892 = vmatpush1.bf16.xpose.msra.mxu0 0
        %893 = vmatprep.subr.bf16.mxu0 0
        %894 = vmatpush1.bf16.xpose.msra.mxu0 0
        %895 = vmatprep.subr.bf16.mxu0 0
        %896 = vmatpush1.bf16.xpose.msra.mxu0 0
        %897 = vmatprep.subr.bf16.mxu0 0
        %898 = vmatpush1.bf16.xpose.msra.mxu0 0
        %899 = vmatprep.subr.bf16.mxu0 0
        %900 = vmatpush1.bf16.xpose.msra.mxu0 0
        %901 = vmatprep.subr.bf16.mxu0 0
        %902 = vmatpush1.bf16.xpose.msra.mxu0 0
        %903 = vmatprep.subr.bf16.mxu0 0
        %904 = vmatpush1.bf16.xpose.msra.mxu0 0
        %905 = vmatprep.subr.bf16.mxu0 0
        %906 = vmatpush1.bf16.xpose.msra.mxu0 0
        %907 = vmatprep.subr.bf16.mxu0 0
        %908 = vmatpush1.bf16.xpose.msra.mxu0 0
        %909 = vmatprep.subr.bf16.mxu0 0
        %910 = vmatpush1.bf16.xpose.msra.mxu0 0
        %911 = vmatprep.subr.bf16.mxu0 0
        %912 = vmatpush1.bf16.xpose.msra.mxu0 0
        %913 = vmatprep.subr.bf16.mxu0 0
        %914 = vmatpush1.bf16.xpose.msra.mxu0 0
        %915 = vmatprep.subr.bf16.mxu0 0
        %916 = vmatpush1.bf16.xpose.msra.mxu0 0
        %917 = vmatprep.subr.bf16.mxu0 0
        %918 = vmatpush1.bf16.xpose.msra.mxu0 0
        %919 = vmatprep.subr.bf16.mxu0 0
        %920 = vmatpush1.bf16.xpose.msra.mxu0 0
        %921 = vmatprep.mubr.bf16.mxu0 0
        %922 = vmatmul.mubr.bf16.gmra.mrb[0].mxu0 %v884
        %v923 = vpop.f32.mrb[0].mxu0
        %v924 = vadd.f32 %v743, %v923
        %v925 = vpop.f32.mrb[0].mxu0
        %v926 = vpop.f32.mrb[0].mxu0
        %v927 = vpop.f32.mrb[0].mxu0
        %928 = vdwg.mxu0
        %v929 = vsel %vm744, %v786, -inf
        %930 = vmax.xlane.f32.xlu0 %v929
        %v931 = vpop.xlane.xlu0 %930
        %v932 = vsel %vm744, %v832, -inf
        %933 = vmax.xlane.f32.xlu0 %v932
        %v934 = vpop.xlane.xlu0 %933
        %v935 = vsel %vm744, %v878, -inf
        %936 = vmax.xlane.f32.xlu0 %v935
        %v937 = vpop.xlane.xlu0 %936
        %v938 = vsel %vm744, %v924, -inf
        %939 = vmax.xlane.f32.xlu0 %v938
        %v940 = vpop.xlane.xlu0 %939
        %v941 = vsub.f32 %v786, %v931
        %v942 = vsub.f32 %v832, %v934
        %v943 = vsub.f32 %v878, %v937
        %v944 = vsub.f32 %v924, %v940
        %v945 = vmul.f32 %v941, 1.442695
        %v946 = vpow.pop %v945
        %v947 = vmul.f32 %v942, 1.442695
        %v948 = vpow.pop %v947
        %v949 = vmul.f32 %v943, 1.442695
        %v950 = vpow.pop %v949
        %v951 = vmul.f32 %v944, 1.442695
        %v952 = vpow.pop %v951
        %v953 = vsel %vm744, %v946, 0.0
        %954 = vadd.xlane.f32.xlu0 %v953
        %v955 = vpop.xlane.xlu0 %954
        %v956 = vsel %vm744, %v948, 0.0
        %957 = vadd.xlane.f32.xlu0 %v956
        %v958 = vpop.xlane.xlu0 %957
        %v959 = vsel %vm744, %v950, 0.0
        %960 = vadd.xlane.f32.xlu0 %v959
        %v961 = vpop.xlane.xlu0 %960
        %v962 = vsel %vm744, %v952, 0.0
        %963 = vadd.xlane.f32.xlu0 %v962
        %v964 = vpop.xlane.xlu0 %963
        %v965 = vrcp.pop %v955
        %v966 = vrcp.pop %v958
        %v967 = vrcp.pop %v961
        %v968 = vrcp.pop %v964
        %v969 = vmul.f32 %v946, %v965
        %v970 = vmul.f32 %v948, %v966
        %v971 = vmul.f32 %v950, %v967
        %v972 = vmul.f32 %v952, %v968
        %v973 = vpack.c.bf16 %v969, %v969
        %v974 = vpack.c.bf16 %v970, %v970
        %v975 = vpack.c.bf16 %v971, %v971
        %v976 = vpack.c.bf16 %v972, %v972
        %v978 = vsel %vm744, %v973, 0
        %vm980 = vcmask 1043456
        %v982 = vsel %vm980, %v736, 0
        %984 = vmatprep.subr.bf16.mxu0 0
        %985 = vmatpush1.bf16.msra.mxu0 %v982
        %986 = vmatprep.subr.bf16.mxu0 0
        %987 = vmatpush1.bf16.msra.mxu0 0
        %988 = vmatprep.subr.bf16.mxu0 0
        %989 = vmatpush1.bf16.msra.mxu0 0
        %990 = vmatprep.subr.bf16.mxu0 0
        %991 = vmatpush1.bf16.msra.mxu0 0
        %992 = vmatprep.subr.bf16.mxu0 0
        %993 = vmatpush1.bf16.msra.mxu0 0
        %994 = vmatprep.subr.bf16.mxu0 0
        %995 = vmatpush1.bf16.msra.mxu0 0
        %996 = vmatprep.subr.bf16.mxu0 0
        %997 = vmatpush1.bf16.msra.mxu0 0
        %998 = vmatprep.subr.bf16.mxu0 0
        %999 = vmatpush1.bf16.msra.mxu0 0
        %1000 = vmatprep.subr.bf16.mxu0 0
        %1001 = vmatpush1.bf16.msra.mxu0 0
        %1002 = vmatprep.subr.bf16.mxu0 0
        %1003 = vmatpush1.bf16.msra.mxu0 0
        %1004 = vmatprep.subr.bf16.mxu0 0
        %1005 = vmatpush1.bf16.msra.mxu0 0
        %1006 = vmatprep.subr.bf16.mxu0 0
        %1007 = vmatpush1.bf16.msra.mxu0 0
        %1008 = vmatprep.subr.bf16.mxu0 0
        %1009 = vmatpush1.bf16.msra.mxu0 0
        %1010 = vmatprep.subr.bf16.mxu0 0
        %1011 = vmatpush1.bf16.msra.mxu0 0
        %1012 = vmatprep.subr.bf16.mxu0 0
        %1013 = vmatpush1.bf16.msra.mxu0 0
        %1014 = vmatprep.subr.bf16.mxu0 0
        %1015 = vmatpush1.bf16.msra.mxu0 0
        %1016 = vmatprep.mubr.bf16.mxu0 0
        %1017 = vmatmul.mubr.bf16.gmra.mrb[0].mxu0 %v978
        %v1018 = vpop.f32.mrb[0].mxu0
        %v1019 = vadd.f32 0.0, %v1018
        %v1020 = vpop.f32.mrb[0].mxu0
        %v1021 = vpop.f32.mrb[0].mxu0
        %v1022 = vpop.f32.mrb[0].mxu0
        %1023 = vdwg.mxu0
        %v1025 = vsel %vm744, %v974, 0
        %v1028 = vsel %vm980, %v737, 0
        %1030 = vmatprep.subr.bf16.mxu0 0
        %1031 = vmatpush1.bf16.msra.mxu0 %v1028
        %1032 = vmatprep.subr.bf16.mxu0 0
        %1033 = vmatpush1.bf16.msra.mxu0 0
        %1034 = vmatprep.subr.bf16.mxu0 0
        %1035 = vmatpush1.bf16.msra.mxu0 0
        %1036 = vmatprep.subr.bf16.mxu0 0
        %1037 = vmatpush1.bf16.msra.mxu0 0
        %1038 = vmatprep.subr.bf16.mxu0 0
        %1039 = vmatpush1.bf16.msra.mxu0 0
        %1040 = vmatprep.subr.bf16.mxu0 0
        %1041 = vmatpush1.bf16.msra.mxu0 0
        %1042 = vmatprep.subr.bf16.mxu0 0
        %1043 = vmatpush1.bf16.msra.mxu0 0
        %1044 = vmatprep.subr.bf16.mxu0 0
        %1045 = vmatpush1.bf16.msra.mxu0 0
        %1046 = vmatprep.subr.bf16.mxu0 0
        %1047 = vmatpush1.bf16.msra.mxu0 0
        %1048 = vmatprep.subr.bf16.mxu0 0
        %1049 = vmatpush1.bf16.msra.mxu0 0
        %1050 = vmatprep.subr.bf16.mxu0 0
        %1051 = vmatpush1.bf16.msra.mxu0 0
        %1052 = vmatprep.subr.bf16.mxu0 0
        %1053 = vmatpush1.bf16.msra.mxu0 0
        %1054 = vmatprep.subr.bf16.mxu0 0
        %1055 = vmatpush1.bf16.msra.mxu0 0
        %1056 = vmatprep.subr.bf16.mxu0 0
        %1057 = vmatpush1.bf16.msra.mxu0 0
        %1058 = vmatprep.subr.bf16.mxu0 0
        %1059 = vmatpush1.bf16.msra.mxu0 0
        %1060 = vmatprep.subr.bf16.mxu0 0
        %1061 = vmatpush1.bf16.msra.mxu0 0
        %1062 = vmatprep.mubr.bf16.mxu0 0
        %1063 = vmatmul.mubr.bf16.gmra.mrb[0].mxu0 %v1025
        %v1064 = vpop.f32.mrb[0].mxu0
        %v1065 = vadd.f32 0.0, %v1064
        %v1066 = vpop.f32.mrb[0].mxu0
        %v1067 = vpop.f32.mrb[0].mxu0
        %v1068 = vpop.f32.mrb[0].mxu0
        %1069 = vdwg.mxu0
        %v1071 = vsel %vm744, %v975, 0
        %v1074 = vsel %vm980, %v738, 0
        %1076 = vmatprep.subr.bf16.mxu0 0
        %1077 = vmatpush1.bf16.msra.mxu0 %v1074
        %1078 = vmatprep.subr.bf16.mxu0 0
        %1079 = vmatpush1.bf16.msra.mxu0 0
        %1080 = vmatprep.subr.bf16.mxu0 0
        %1081 = vmatpush1.bf16.msra.mxu0 0
        %1082 = vmatprep.subr.bf16.mxu0 0
        %1083 = vmatpush1.bf16.msra.mxu0 0
        %1084 = vmatprep.subr.bf16.mxu0 0
        %1085 = vmatpush1.bf16.msra.mxu0 0
        %1086 = vmatprep.subr.bf16.mxu0 0
        %1087 = vmatpush1.bf16.msra.mxu0 0
        %1088 = vmatprep.subr.bf16.mxu0 0
        %1089 = vmatpush1.bf16.msra.mxu0 0
        %1090 = vmatprep.subr.bf16.mxu0 0
        %1091 = vmatpush1.bf16.msra.mxu0 0
        %1092 = vmatprep.subr.bf16.mxu0 0
        %1093 = vmatpush1.bf16.msra.mxu0 0
        %1094 = vmatprep.subr.bf16.mxu0 0
        %1095 = vmatpush1.bf16.msra.mxu0 0
        %1096 = vmatprep.subr.bf16.mxu0 0
        %1097 = vmatpush1.bf16.msra.mxu0 0
        %1098 = vmatprep.subr.bf16.mxu0 0
        %1099 = vmatpush1.bf16.msra.mxu0 0
        %1100 = vmatprep.subr.bf16.mxu0 0
        %1101 = vmatpush1.bf16.msra.mxu0 0
        %1102 = vmatprep.subr.bf16.mxu0 0
        %1103 = vmatpush1.bf16.msra.mxu0 0
        %1104 = vmatprep.subr.bf16.mxu0 0
        %1105 = vmatpush1.bf16.msra.mxu0 0
        %1106 = vmatprep.subr.bf16.mxu0 0
        %1107 = vmatpush1.bf16.msra.mxu0 0
        %1108 = vmatprep.mubr.bf16.mxu0 0
        %1109 = vmatmul.mubr.bf16.gmra.mrb[0].mxu0 %v1071
        %v1110 = vpop.f32.mrb[0].mxu0
        %v1111 = vadd.f32 0.0, %v1110
        %v1112 = vpop.f32.mrb[0].mxu0
        %v1113 = vpop.f32.mrb[0].mxu0
        %v1114 = vpop.f32.mrb[0].mxu0
        %1115 = vdwg.mxu0
        %v1117 = vsel %vm744, %v976, 0
        %v1120 = vsel %vm980, %v739, 0
        %1122 = vmatprep.subr.bf16.mxu0 0
        %1123 = vmatpush1.bf16.msra.mxu0 %v1120
        %1124 = vmatprep.subr.bf16.mxu0 0
        %1125 = vmatpush1.bf16.msra.mxu0 0
        %1126 = vmatprep.subr.bf16.mxu0 0
        %1127 = vmatpush1.bf16.msra.mxu0 0
        %1128 = vmatprep.subr.bf16.mxu0 0
        %1129 = vmatpush1.bf16.msra.mxu0 0
        %1130 = vmatprep.subr.bf16.mxu0 0
        %1131 = vmatpush1.bf16.msra.mxu0 0
        %1132 = vmatprep.subr.bf16.mxu0 0
        %1133 = vmatpush1.bf16.msra.mxu0 0
        %1134 = vmatprep.subr.bf16.mxu0 0
        %1135 = vmatpush1.bf16.msra.mxu0 0
        %1136 = vmatprep.subr.bf16.mxu0 0
        %1137 = vmatpush1.bf16.msra.mxu0 0
        %1138 = vmatprep.subr.bf16.mxu0 0
        %1139 = vmatpush1.bf16.msra.mxu0 0
        %1140 = vmatprep.subr.bf16.mxu0 0
        %1141 = vmatpush1.bf16.msra.mxu0 0
        %1142 = vmatprep.subr.bf16.mxu0 0
        %1143 = vmatpush1.bf16.msra.mxu0 0
        %1144 = vmatprep.subr.bf16.mxu0 0
        %1145 = vmatpush1.bf16.msra.mxu0 0
        %1146 = vmatprep.subr.bf16.mxu0 0
        %1147 = vmatpush1.bf16.msra.mxu0 0
        %1148 = vmatprep.subr.bf16.mxu0 0
        %1149 = vmatpush1.bf16.msra.mxu0 0
        %1150 = vmatprep.subr.bf16.mxu0 0
        %1151 = vmatpush1.bf16.msra.mxu0 0
        %1152 = vmatprep.subr.bf16.mxu0 0
        %1153 = vmatpush1.bf16.msra.mxu0 0
        %1154 = vmatprep.mubr.bf16.mxu0 0
        %1155 = vmatmul.mubr.bf16.gmra.mrb[0].mxu0 %v1117
        %v1156 = vpop.f32.mrb[0].mxu0
        %v1157 = vadd.f32 0.0, %v1156
        %v1158 = vpop.f32.mrb[0].mxu0
        %v1159 = vpop.f32.mrb[0].mxu0
        %v1160 = vpop.f32.mrb[0].mxu0
        %1161 = vdwg.mxu0
        %v1162 = vpack.c.bf16 %v1065, %v1019
        %v1163 = vpack.c.bf16 %v1157, %v1111
        %v1164 = vld [vmem:[%s7] sm:$0xf]
        %s1165 = scalar_lea.vmem %s371, 32 [#allocation2]
        %v1166 = vld [vmem:[%s1165] sm:$0xff]
        %v1167 = vld [vmem:[%s1165 + $0x8] sm:$0xff]
        %v1168 = vld [vmem:[%s1165 + $0x10] sm:$0xff]
        %v1169 = vld [vmem:[%s1165 + $0x18] sm:$0xff]
        %1170 = vrot.lane.b32.xlu0 %v716, 120
        %v1171 = vpop.permute.xlu0 %1170
        %1172 = vrot.lane.b32.xlu0 %v726, 120
        %v1173 = vpop.permute.xlu0 %1172
        %v1175 = vsel %vm744, %v1171, 0
        %v1178 = vsel %vm744, %v1173, 0
        %1180 = vmatprep.subr.bf16.mxu0 0
        %1181 = vmatpush1.bf16.xpose.msra.mxu0 %v1178
        %1182 = vmatprep.subr.bf16.mxu0 0
        %1183 = vmatpush1.bf16.xpose.msra.mxu0 0
        %1184 = vmatprep.subr.bf16.mxu0 0
        %1185 = vmatpush1.bf16.xpose.msra.mxu0 0
        %1186 = vmatprep.subr.bf16.mxu0 0
        %1187 = vmatpush1.bf16.xpose.msra.mxu0 0
        %1188 = vmatprep.subr.bf16.mxu0 0
        %1189 = vmatpush1.bf16.xpose.msra.mxu0 0
        %1190 = vmatprep.subr.bf16.mxu0 0
        %1191 = vmatpush1.bf16.xpose.msra.mxu0 0
        %1192 = vmatprep.subr.bf16.mxu0 0
        %1193 = vmatpush1.bf16.xpose.msra.mxu0 0
        %1194 = vmatprep.subr.bf16.mxu0 0
        %1195 = vmatpush1.bf16.xpose.msra.mxu0 0
        %1196 = vmatprep.subr.bf16.mxu0 0
        %1197 = vmatpush1.bf16.xpose.msra.mxu0 0
        %1198 = vmatprep.subr.bf16.mxu0 0
        %1199 = vmatpush1.bf16.xpose.msra.mxu0 0
        %1200 = vmatprep.subr.bf16.mxu0 0
        %1201 = vmatpush1.bf16.xpose.msra.mxu0 0
        %1202 = vmatprep.subr.bf16.mxu0 0
        %1203 = vmatpush1.bf16.xpose.msra.mxu0 0
        %1204 = vmatprep.subr.bf16.mxu0 0
        %1205 = vmatpush1.bf16.xpose.msra.mxu0 0
        %1206 = vmatprep.subr.bf16.mxu0 0
        %1207 = vmatpush1.bf16.xpose.msra.mxu0 0
        %1208 = vmatprep.subr.bf16.mxu0 0
        %1209 = vmatpush1.bf16.xpose.msra.mxu0 0
        %1210 = vmatprep.subr.bf16.mxu0 0
        %1211 = vmatpush1.bf16.xpose.msra.mxu0 0
        %1212 = vmatprep.mubr.bf16.mxu0 0
        %1213 = vmatmul.mubr.bf16.gmra.mrb[0].mxu0 %v1175
        %v1214 = vpop.f32.mrb[0].mxu0
        %v1215 = vadd.f32 %v1166, %v1214
        %v1216 = vpop.f32.mrb[0].mxu0
        %v1217 = vpop.f32.mrb[0].mxu0
        %v1218 = vpop.f32.mrb[0].mxu0
        %1219 = vdwg.mxu0
        %1220 = vrot.lane.b32.xlu0 %v717, 120
        %v1221 = vpop.permute.xlu0 %1220
        %1222 = vrot.lane.b32.xlu0 %v727, 120
        %v1223 = vpop.permute.xlu0 %1222
        %v1225 = vsel %vm744, %v1221, 0
        %v1228 = vsel %vm744, %v1223, 0
        %1230 = vmatprep.subr.bf16.mxu0 0
        %1231 = vmatpush1.bf16.xpose.msra.mxu0 %v1228
        %1232 = vmatprep.subr.bf16.mxu0 0
        %1233 = vmatpush1.bf16.xpose.msra.mxu0 0
        %1234 = vmatprep.subr.bf16.mxu0 0
        %1235 = vmatpush1.bf16.xpose.msra.mxu0 0
        %1236 = vmatprep.subr.bf16.mxu0 0
        %1237 = vmatpush1.bf16.xpose.msra.mxu0 0
        %1238 = vmatprep.subr.bf16.mxu0 0
        %1239 = vmatpush1.bf16.xpose.msra.mxu0 0
        %1240 = vmatprep.subr.bf16.mxu0 0
        %1241 = vmatpush1.bf16.xpose.msra.mxu0 0
        %1242 = vmatprep.subr.bf16.mxu0 0
        %1243 = vmatpush1.bf16.xpose.msra.mxu0 0
        %1244 = vmatprep.subr.bf16.mxu0 0
        %1245 = vmatpush1.bf16.xpose.msra.mxu0 0
        %1246 = vmatprep.subr.bf16.mxu0 0
        %1247 = vmatpush1.bf16.xpose.msra.mxu0 0
        %1248 = vmatprep.subr.bf16.mxu0 0
        %1249 = vmatpush1.bf16.xpose.msra.mxu0 0
        %1250 = vmatprep.subr.bf16.mxu0 0
        %1251 = vmatpush1.bf16.xpose.msra.mxu0 0
        %1252 = vmatprep.subr.bf16.mxu0 0
        %1253 = vmatpush1.bf16.xpose.msra.mxu0 0
        %1254 = vmatprep.subr.bf16.mxu0 0
        %1255 = vmatpush1.bf16.xpose.msra.mxu0 0
        %1256 = vmatprep.subr.bf16.mxu0 0
        %1257 = vmatpush1.bf16.xpose.msra.mxu0 0
        %1258 = vmatprep.subr.bf16.mxu0 0
        %1259 = vmatpush1.bf16.xpose.msra.mxu0 0
        %1260 = vmatprep.subr.bf16.mxu0 0
        %1261 = vmatpush1.bf16.xpose.msra.mxu0 0
        %1262 = vmatprep.mubr.bf16.mxu0 0
        %1263 = vmatmul.mubr.bf16.gmra.mrb[0].mxu0 %v1225
        %v1264 = vpop.f32.mrb[0].mxu0
        %v1265 = vadd.f32 %v1167, %v1264
        %v1266 = vpop.f32.mrb[0].mxu0
        %v1267 = vpop.f32.mrb[0].mxu0
        %v1268 = vpop.f32.mrb[0].mxu0
        %1269 = vdwg.mxu0
        %1270 = vrot.lane.b32.xlu0 %v718, 120
        %v1271 = vpop.permute.xlu0 %1270
        %1272 = vrot.lane.b32.xlu0 %v728, 120
        %v1273 = vpop.permute.xlu0 %1272
        %v1275 = vsel %vm744, %v1271, 0
        %v1278 = vsel %vm744, %v1273, 0
        %1280 = vmatprep.subr.bf16.mxu0 0
        %1281 = vmatpush1.bf16.xpose.msra.mxu0 %v1278
        %1282 = vmatprep.subr.bf16.mxu0 0
        %1283 = vmatpush1.bf16.xpose.msra.mxu0 0
        %1284 = vmatprep.subr.bf16.mxu0 0
        %1285 = vmatpush1.bf16.xpose.msra.mxu0 0
        %1286 = vmatprep.subr.bf16.mxu0 0
        %1287 = vmatpush1.bf16.xpose.msra.mxu0 0
        %1288 = vmatprep.subr.bf16.mxu0 0
        %1289 = vmatpush1.bf16.xpose.msra.mxu0 0
        %1290 = vmatprep.subr.bf16.mxu0 0
        %1291 = vmatpush1.bf16.xpose.msra.mxu0 0
        %1292 = vmatprep.subr.bf16.mxu0 0
        %1293 = vmatpush1.bf16.xpose.msra.mxu0 0
        %1294 = vmatprep.subr.bf16.mxu0 0
        %1295 = vmatpush1.bf16.xpose.msra.mxu0 0
        %1296 = vmatprep.subr.bf16.mxu0 0
        %1297 = vmatpush1.bf16.xpose.msra.mxu0 0
        %1298 = vmatprep.subr.bf16.mxu0 0
        %1299 = vmatpush1.bf16.xpose.msra.mxu0 0
        %1300 = vmatprep.subr.bf16.mxu0 0
        %1301 = vmatpush1.bf16.xpose.msra.mxu0 0
        %1302 = vmatprep.subr.bf16.mxu0 0
        %1303 = vmatpush1.bf16.xpose.msra.mxu0 0
        %1304 = vmatprep.subr.bf16.mxu0 0
        %1305 = vmatpush1.bf16.xpose.msra.mxu0 0
        %1306 = vmatprep.subr.bf16.mxu0 0
        %1307 = vmatpush1.bf16.xpose.msra.mxu0 0
        %1308 = vmatprep.subr.bf16.mxu0 0
        %1309 = vmatpush1.bf16.xpose.msra.mxu0 0
        %1310 = vmatprep.subr.bf16.mxu0 0
        %1311 = vmatpush1.bf16.xpose.msra.mxu0 0
        %1312 = vmatprep.mubr.bf16.mxu0 0
        %1313 = vmatmul.mubr.bf16.gmra.mrb[0].mxu0 %v1275
        %v1314 = vpop.f32.mrb[0].mxu0
        %v1315 = vadd.f32 %v1168, %v1314
        %v1316 = vpop.f32.mrb[0].mxu0
        %v1317 = vpop.f32.mrb[0].mxu0
        %v1318 = vpop.f32.mrb[0].mxu0
        %1319 = vdwg.mxu0
        %1320 = vrot.lane.b32.xlu0 %v719, 120
        %v1321 = vpop.permute.xlu0 %1320
        %1322 = vrot.lane.b32.xlu0 %v729, 120
        %v1323 = vpop.permute.xlu0 %1322
        %v1325 = vsel %vm744, %v1321, 0
        %v1328 = vsel %vm744, %v1323, 0
        %1330 = vmatprep.subr.bf16.mxu0 0
        %1331 = vmatpush1.bf16.xpose.msra.mxu0 %v1328
        %1332 = vmatprep.subr.bf16.mxu0 0
        %1333 = vmatpush1.bf16.xpose.msra.mxu0 0
        %1334 = vmatprep.subr.bf16.mxu0 0
        %1335 = vmatpush1.bf16.xpose.msra.mxu0 0
        %1336 = vmatprep.subr.bf16.mxu0 0
        %1337 = vmatpush1.bf16.xpose.msra.mxu0 0
        %1338 = vmatprep.subr.bf16.mxu0 0
        %1339 = vmatpush1.bf16.xpose.msra.mxu0 0
        %1340 = vmatprep.subr.bf16.mxu0 0
        %1341 = vmatpush1.bf16.xpose.msra.mxu0 0
        %1342 = vmatprep.subr.bf16.mxu0 0
        %1343 = vmatpush1.bf16.xpose.msra.mxu0 0
        %1344 = vmatprep.subr.bf16.mxu0 0
        %1345 = vmatpush1.bf16.xpose.msra.mxu0 0
        %1346 = vmatprep.subr.bf16.mxu0 0
        %1347 = vmatpush1.bf16.xpose.msra.mxu0 0
        %1348 = vmatprep.subr.bf16.mxu0 0
        %1349 = vmatpush1.bf16.xpose.msra.mxu0 0
        %1350 = vmatprep.subr.bf16.mxu0 0
        %1351 = vmatpush1.bf16.xpose.msra.mxu0 0
        %1352 = vmatprep.subr.bf16.mxu0 0
        %1353 = vmatpush1.bf16.xpose.msra.mxu0 0
        %1354 = vmatprep.subr.bf16.mxu0 0
        %1355 = vmatpush1.bf16.xpose.msra.mxu0 0
        %1356 = vmatprep.subr.bf16.mxu0 0
        %1357 = vmatpush1.bf16.xpose.msra.mxu0 0
        %1358 = vmatprep.subr.bf16.mxu0 0
        %1359 = vmatpush1.bf16.xpose.msra.mxu0 0
        %1360 = vmatprep.subr.bf16.mxu0 0
        %1361 = vmatpush1.bf16.xpose.msra.mxu0 0
        %1362 = vmatprep.mubr.bf16.mxu0 0
        %1363 = vmatmul.mubr.bf16.gmra.mrb[0].mxu0 %v1325
        %v1364 = vpop.f32.mrb[0].mxu0
        %v1365 = vadd.f32 %v1169, %v1364
        %v1366 = vpop.f32.mrb[0].mxu0
        %v1367 = vpop.f32.mrb[0].mxu0
        %v1368 = vpop.f32.mrb[0].mxu0
        %1369 = vdwg.mxu0
        %v1370 = vsel %vm744, %v1215, -inf
        %1371 = vmax.xlane.f32.xlu0 %v1370
        %v1372 = vpop.xlane.xlu0 %1371
        %v1373 = vsel %vm744, %v1265, -inf
        %1374 = vmax.xlane.f32.xlu0 %v1373
        %v1375 = vpop.xlane.xlu0 %1374
        %v1376 = vsel %vm744, %v1315, -inf
        %1377 = vmax.xlane.f32.xlu0 %v1376
        %v1378 = vpop.xlane.xlu0 %1377
        %v1379 = vsel %vm744, %v1365, -inf
        %1380 = vmax.xlane.f32.xlu0 %v1379
        %v1381 = vpop.xlane.xlu0 %1380
        %v1382 = vsub.f32 %v1215, %v1372
        %v1383 = vsub.f32 %v1265, %v1375
        %v1384 = vsub.f32 %v1315, %v1378
        %v1385 = vsub.f32 %v1365, %v1381
        %v1386 = vmul.f32 %v1382, 1.442695
        %v1387 = vpow.pop %v1386
        %v1388 = vmul.f32 %v1383, 1.442695
        %v1389 = vpow.pop %v1388
        %v1390 = vmul.f32 %v1384, 1.442695
        %v1391 = vpow.pop %v1390
        %v1392 = vmul.f32 %v1385, 1.442695
        %v1393 = vpow.pop %v1392
        %v1394 = vsel %vm744, %v1387, 0.0
        %1395 = vadd.xlane.f32.xlu0 %v1394
        %v1396 = vpop.xlane.xlu0 %1395
        %v1397 = vsel %vm744, %v1389, 0.0
        %1398 = vadd.xlane.f32.xlu0 %v1397
        %v1399 = vpop.xlane.xlu0 %1398
        %v1400 = vsel %vm744, %v1391, 0.0
        %1401 = vadd.xlane.f32.xlu0 %v1400
        %v1402 = vpop.xlane.xlu0 %1401
        %v1403 = vsel %vm744, %v1393, 0.0
        %1404 = vadd.xlane.f32.xlu0 %v1403
        %v1405 = vpop.xlane.xlu0 %1404
        %v1406 = vrcp.pop %v1396
        %v1407 = vrcp.pop %v1399
        %v1408 = vrcp.pop %v1402
        %v1409 = vrcp.pop %v1405
        %v1410 = vmul.f32 %v1387, %v1406
        %v1411 = vmul.f32 %v1389, %v1407
        %v1412 = vmul.f32 %v1391, %v1408
        %v1413 = vmul.f32 %v1393, %v1409
        %v1414 = vpack.c.bf16 %v1410, %v1410
        %v1415 = vpack.c.bf16 %v1411, %v1411
        %v1416 = vpack.c.bf16 %v1412, %v1412
        %v1417 = vpack.c.bf16 %v1413, %v1413
        %1418 = vrot.lane.b32.xlu0 %v736, 120
        %v1419 = vpop.permute.xlu0 %1418
        %v1421 = vsel %vm744, %v1414, 0
        %v1424 = vsel %vm980, %v1419, 0
        %1426 = vmatprep.subr.bf16.mxu0 0
        %1427 = vmatpush1.bf16.msra.mxu0 %v1424
        %1428 = vmatprep.subr.bf16.mxu0 0
        %1429 = vmatpush1.bf16.msra.mxu0 0
        %1430 = vmatprep.subr.bf16.mxu0 0
        %1431 = vmatpush1.bf16.msra.mxu0 0
        %1432 = vmatprep.subr.bf16.mxu0 0
        %1433 = vmatpush1.bf16.msra.mxu0 0
        %1434 = vmatprep.subr.bf16.mxu0 0
        %1435 = vmatpush1.bf16.msra.mxu0 0
        %1436 = vmatprep.subr.bf16.mxu0 0
        %1437 = vmatpush1.bf16.msra.mxu0 0
        %1438 = vmatprep.subr.bf16.mxu0 0
        %1439 = vmatpush1.bf16.msra.mxu0 0
        %1440 = vmatprep.subr.bf16.mxu0 0
        %1441 = vmatpush1.bf16.msra.mxu0 0
        %1442 = vmatprep.subr.bf16.mxu0 0
        %1443 = vmatpush1.bf16.msra.mxu0 0
        %1444 = vmatprep.subr.bf16.mxu0 0
        %1445 = vmatpush1.bf16.msra.mxu0 0
        %1446 = vmatprep.subr.bf16.mxu0 0
        %1447 = vmatpush1.bf16.msra.mxu0 0
        %1448 = vmatprep.subr.bf16.mxu0 0
        %1449 = vmatpush1.bf16.msra.mxu0 0
        %1450 = vmatprep.subr.bf16.mxu0 0
        %1451 = vmatpush1.bf16.msra.mxu0 0
        %1452 = vmatprep.subr.bf16.mxu0 0
        %1453 = vmatpush1.bf16.msra.mxu0 0
        %1454 = vmatprep.subr.bf16.mxu0 0
        %1455 = vmatpush1.bf16.msra.mxu0 0
        %1456 = vmatprep.subr.bf16.mxu0 0
        %1457 = vmatpush1.bf16.msra.mxu0 0
        %1458 = vmatprep.mubr.bf16.mxu0 0
        %1459 = vmatmul.mubr.bf16.gmra.mrb[0].mxu0 %v1421
        %v1460 = vpop.f32.mrb[0].mxu0
        %v1461 = vadd.f32 0.0, %v1460
        %v1462 = vpop.f32.mrb[0].mxu0
        %v1463 = vpop.f32.mrb[0].mxu0
        %v1464 = vpop.f32.mrb[0].mxu0
        %1465 = vdwg.mxu0
        %1466 = vrot.lane.b32.xlu0 %v737, 120
        %v1467 = vpop.permute.xlu0 %1466
        %v1469 = vsel %vm744, %v1415, 0
        %v1472 = vsel %vm980, %v1467, 0
        %1474 = vmatprep.subr.bf16.mxu0 0
        %1475 = vmatpush1.bf16.msra.mxu0 %v1472
        %1476 = vmatprep.subr.bf16.mxu0 0
        %1477 = vmatpush1.bf16.msra.mxu0 0
        %1478 = vmatprep.subr.bf16.mxu0 0
        %1479 = vmatpush1.bf16.msra.mxu0 0
        %1480 = vmatprep.subr.bf16.mxu0 0
        %1481 = vmatpush1.bf16.msra.mxu0 0
        %1482 = vmatprep.subr.bf16.mxu0 0
        %1483 = vmatpush1.bf16.msra.mxu0 0
        %1484 = vmatprep.subr.bf16.mxu0 0
        %1485 = vmatpush1.bf16.msra.mxu0 0
        %1486 = vmatprep.subr.bf16.mxu0 0
        %1487 = vmatpush1.bf16.msra.mxu0 0
        %1488 = vmatprep.subr.bf16.mxu0 0
        %1489 = vmatpush1.bf16.msra.mxu0 0
        %1490 = vmatprep.subr.bf16.mxu0 0
        %1491 = vmatpush1.bf16.msra.mxu0 0
        %1492 = vmatprep.subr.bf16.mxu0 0
        %1493 = vmatpush1.bf16.msra.mxu0 0
        %1494 = vmatprep.subr.bf16.mxu0 0
        %1495 = vmatpush1.bf16.msra.mxu0 0
        %1496 = vmatprep.subr.bf16.mxu0 0
        %1497 = vmatpush1.bf16.msra.mxu0 0
        %1498 = vmatprep.subr.bf16.mxu0 0
        %1499 = vmatpush1.bf16.msra.mxu0 0
        %1500 = vmatprep.subr.bf16.mxu0 0
        %1501 = vmatpush1.bf16.msra.mxu0 0
        %1502 = vmatprep.subr.bf16.mxu0 0
        %1503 = vmatpush1.bf16.msra.mxu0 0
        %1504 = vmatprep.subr.bf16.mxu0 0
        %1505 = vmatpush1.bf16.msra.mxu0 0
        %1506 = vmatprep.mubr.bf16.mxu0 0
        %1507 = vmatmul.mubr.bf16.gmra.mrb[0].mxu0 %v1469
        %v1508 = vpop.f32.mrb[0].mxu0
        %v1509 = vadd.f32 0.0, %v1508
        %v1510 = vpop.f32.mrb[0].mxu0
        %v1511 = vpop.f32.mrb[0].mxu0
        %v1512 = vpop.f32.mrb[0].mxu0
        %1513 = vdwg.mxu0
        %1514 = vrot.lane.b32.xlu0 %v738, 120
        %v1515 = vpop.permute.xlu0 %1514
        %v1517 = vsel %vm744, %v1416, 0
        %v1520 = vsel %vm980, %v1515, 0
        %1522 = vmatprep.subr.bf16.mxu0 0
        %1523 = vmatpush1.bf16.msra.mxu0 %v1520
        %1524 = vmatprep.subr.bf16.mxu0 0
        %1525 = vmatpush1.bf16.msra.mxu0 0
        %1526 = vmatprep.subr.bf16.mxu0 0
        %1527 = vmatpush1.bf16.msra.mxu0 0
        %1528 = vmatprep.subr.bf16.mxu0 0
        %1529 = vmatpush1.bf16.msra.mxu0 0
        %1530 = vmatprep.subr.bf16.mxu0 0
        %1531 = vmatpush1.bf16.msra.mxu0 0
        %1532 = vmatprep.subr.bf16.mxu0 0
        %1533 = vmatpush1.bf16.msra.mxu0 0
        %1534 = vmatprep.subr.bf16.mxu0 0
        %1535 = vmatpush1.bf16.msra.mxu0 0
        %1536 = vmatprep.subr.bf16.mxu0 0
        %1537 = vmatpush1.bf16.msra.mxu0 0
        %1538 = vmatprep.subr.bf16.mxu0 0
        %1539 = vmatpush1.bf16.msra.mxu0 0
        %1540 = vmatprep.subr.bf16.mxu0 0
        %1541 = vmatpush1.bf16.msra.mxu0 0
        %1542 = vmatprep.subr.bf16.mxu0 0
        %1543 = vmatpush1.bf16.msra.mxu0 0
        %1544 = vmatprep.subr.bf16.mxu0 0
        %1545 = vmatpush1.bf16.msra.mxu0 0
        %1546 = vmatprep.subr.bf16.mxu0 0
        %1547 = vmatpush1.bf16.msra.mxu0 0
        %1548 = vmatprep.subr.bf16.mxu0 0
        %1549 = vmatpush1.bf16.msra.mxu0 0
        %1550 = vmatprep.subr.bf16.mxu0 0
        %1551 = vmatpush1.bf16.msra.mxu0 0
        %1552 = vmatprep.subr.bf16.mxu0 0
        %1553 = vmatpush1.bf16.msra.mxu0 0
        %1554 = vmatprep.mubr.bf16.mxu0 0
        %1555 = vmatmul.mubr.bf16.gmra.mrb[0].mxu0 %v1517
        %v1556 = vpop.f32.mrb[0].mxu0
        %v1557 = vadd.f32 0.0, %v1556
        %v1558 = vpop.f32.mrb[0].mxu0
        %v1559 = vpop.f32.mrb[0].mxu0
        %v1560 = vpop.f32.mrb[0].mxu0
        %1561 = vdwg.mxu0
        %1562 = vrot.lane.b32.xlu0 %v739, 120
        %v1563 = vpop.permute.xlu0 %1562
        %v1565 = vsel %vm744, %v1417, 0
        %v1568 = vsel %vm980, %v1563, 0
        %1570 = vmatprep.subr.bf16.mxu0 0
        %1571 = vmatpush1.bf16.msra.mxu0 %v1568
        %1572 = vmatprep.subr.bf16.mxu0 0
        %1573 = vmatpush1.bf16.msra.mxu0 0
        %1574 = vmatprep.subr.bf16.mxu0 0
        %1575 = vmatpush1.bf16.msra.mxu0 0
        %1576 = vmatprep.subr.bf16.mxu0 0
        %1577 = vmatpush1.bf16.msra.mxu0 0
        %1578 = vmatprep.subr.bf16.mxu0 0
        %1579 = vmatpush1.bf16.msra.mxu0 0
        %1580 = vmatprep.subr.bf16.mxu0 0
        %1581 = vmatpush1.bf16.msra.mxu0 0
        %1582 = vmatprep.subr.bf16.mxu0 0
        %1583 = vmatpush1.bf16.msra.mxu0 0
        %1584 = vmatprep.subr.bf16.mxu0 0
        %1585 = vmatpush1.bf16.msra.mxu0 0
        %1586 = vmatprep.subr.bf16.mxu0 0
        %1587 = vmatpush1.bf16.msra.mxu0 0
        %1588 = vmatprep.subr.bf16.mxu0 0
        %1589 = vmatpush1.bf16.msra.mxu0 0
        %1590 = vmatprep.subr.bf16.mxu0 0
        %1591 = vmatpush1.bf16.msra.mxu0 0
        %1592 = vmatprep.subr.bf16.mxu0 0
        %1593 = vmatpush1.bf16.msra.mxu0 0
        %1594 = vmatprep.subr.bf16.mxu0 0
        %1595 = vmatpush1.bf16.msra.mxu0 0
        %1596 = vmatprep.subr.bf16.mxu0 0
        %1597 = vmatpush1.bf16.msra.mxu0 0
        %1598 = vmatprep.subr.bf16.mxu0 0
        %1599 = vmatpush1.bf16.msra.mxu0 0
        %1600 = vmatprep.subr.bf16.mxu0 0
        %1601 = vmatpush1.bf16.msra.mxu0 0
        %1602 = vmatprep.mubr.bf16.mxu0 0
        %1603 = vmatmul.mubr.bf16.gmra.mrb[0].mxu0 %v1565
        %v1604 = vpop.f32.mrb[0].mxu0
        %v1605 = vadd.f32 0.0, %v1604
        %v1606 = vpop.f32.mrb[0].mxu0
        %v1607 = vpop.f32.mrb[0].mxu0
        %v1608 = vpop.f32.mrb[0].mxu0
        %1609 = vdwg.mxu0
        %v1610 = vpack.c.bf16 %v1509, %v1461
        %v1611 = vpack.c.bf16 %v1605, %v1557
        %s1612 = scalar_lea.vmem %s7, 4
        %v1613 = vld [vmem:[%s1612] sm:$0xf]
        %v1615 = vsel %vm744, %v1610, 0
        %v1618 = vsel %vm744, %v1611, 0
        %v1621 = vsel %vm980, %v1613, 0
        %1623 = vmatprep.subr.bf16.mxu0 0
        %1624 = vmatpush1.bf16.msra.mxu0 %v1621
        %1625 = vmatprep.subr.bf16.mxu0 0
        %1626 = vmatpush1.bf16.msra.mxu0 0
        %1627 = vmatprep.subr.bf16.mxu0 0
        %1628 = vmatpush1.bf16.msra.mxu0 0
        %1629 = vmatprep.subr.bf16.mxu0 0
        %1630 = vmatpush1.bf16.msra.mxu0 0
        %1631 = vmatprep.subr.bf16.mxu0 0
        %1632 = vmatpush1.bf16.msra.mxu0 0
        %1633 = vmatprep.subr.bf16.mxu0 0
        %1634 = vmatpush1.bf16.msra.mxu0 0
        %1635 = vmatprep.subr.bf16.mxu0 0
        %1636 = vmatpush1.bf16.msra.mxu0 0
        %1637 = vmatprep.subr.bf16.mxu0 0
        %1638 = vmatpush1.bf16.msra.mxu0 0
        %1639 = vmatprep.subr.bf16.mxu0 0
        %1640 = vmatpush1.bf16.msra.mxu0 0
        %1641 = vmatprep.subr.bf16.mxu0 0
        %1642 = vmatpush1.bf16.msra.mxu0 0
        %1643 = vmatprep.subr.bf16.mxu0 0
        %1644 = vmatpush1.bf16.msra.mxu0 0
        %1645 = vmatprep.subr.bf16.mxu0 0
        %1646 = vmatpush1.bf16.msra.mxu0 0
        %1647 = vmatprep.subr.bf16.mxu0 0
        %1648 = vmatpush1.bf16.msra.mxu0 0
        %1649 = vmatprep.subr.bf16.mxu0 0
        %1650 = vmatpush1.bf16.msra.mxu0 0
        %1651 = vmatprep.subr.bf16.mxu0 0
        %1652 = vmatpush1.bf16.msra.mxu0 0
        %1653 = vmatprep.subr.bf16.mxu0 0
        %1654 = vmatpush1.bf16.msra.mxu0 0
        %1655 = vmatprep.mubr.bf16.mxu0 0
        %1656 = vmatmul.mubr.bf16.gmra.mrb[0].mxu0 %v1615
        %v1657 = vpop.f32.mrb[0].mxu0
        %v1658 = vadd.f32 0.0, %v1657
        %v1659 = vpop.f32.mrb[0].mxu0
        %v1660 = vpop.f32.mrb[0].mxu0
        %v1661 = vadd.f32 0.0, %v1660
        %v1662 = vpop.f32.mrb[0].mxu0
        %1663 = vmatprep.mubr.bf16.mxu0 0
        %1664 = vmatmul.mubr.bf16.gmra.mrb[0].mxu0 %v1618
        %v1665 = vpop.f32.mrb[0].mxu0
        %v1666 = vadd.f32 0.0, %v1665
        %v1667 = vpop.f32.mrb[0].mxu0
        %v1668 = vpop.f32.mrb[0].mxu0
        %v1669 = vadd.f32 0.0, %v1668
        %v1670 = vpop.f32.mrb[0].mxu0
        %1671 = vdwg.mxu0
        %v1673 = vsel %vm744, %v1162, 0
        %v1676 = vsel %vm744, %v1163, 0
        %v1679 = vsel %vm980, %v1164, 0
        %1681 = vmatprep.subr.bf16.mxu0 0
        %1682 = vmatpush1.bf16.msra.mxu0 %v1679
        %1683 = vmatprep.subr.bf16.mxu0 0
        %1684 = vmatpush1.bf16.msra.mxu0 0
        %1685 = vmatprep.subr.bf16.mxu0 0
        %1686 = vmatpush1.bf16.msra.mxu0 0
        %1687 = vmatprep.subr.bf16.mxu0 0
        %1688 = vmatpush1.bf16.msra.mxu0 0
        %1689 = vmatprep.subr.bf16.mxu0 0
        %1690 = vmatpush1.bf16.msra.mxu0 0
        %1691 = vmatprep.subr.bf16.mxu0 0
        %1692 = vmatpush1.bf16.msra.mxu0 0
        %1693 = vmatprep.subr.bf16.mxu0 0
        %1694 = vmatpush1.bf16.msra.mxu0 0
        %1695 = vmatprep.subr.bf16.mxu0 0
        %1696 = vmatpush1.bf16.msra.mxu0 0
        %1697 = vmatprep.subr.bf16.mxu0 0
        %1698 = vmatpush1.bf16.msra.mxu0 0
        %1699 = vmatprep.subr.bf16.mxu0 0
        %1700 = vmatpush1.bf16.msra.mxu0 0
        %1701 = vmatprep.subr.bf16.mxu0 0
        %1702 = vmatpush1.bf16.msra.mxu0 0
        %1703 = vmatprep.subr.bf16.mxu0 0
        %1704 = vmatpush1.bf16.msra.mxu0 0
        %1705 = vmatprep.subr.bf16.mxu0 0
        %1706 = vmatpush1.bf16.msra.mxu0 0
        %1707 = vmatprep.subr.bf16.mxu0 0
        %1708 = vmatpush1.bf16.msra.mxu0 0
        %1709 = vmatprep.subr.bf16.mxu0 0
        %1710 = vmatpush1.bf16.msra.mxu0 0
        %1711 = vmatprep.subr.bf16.mxu0 0
        %1712 = vmatpush1.bf16.msra.mxu0 0
        %1713 = vmatprep.mubr.bf16.mxu0 0
        %1714 = vmatmul.mubr.bf16.gmra.mrb[0].mxu0 %v1673
        %v1715 = vpop.f32.mrb[0].mxu0
        %v1716 = vadd.f32 %v1658, %v1715
        %v1717 = vpop.f32.mrb[0].mxu0
        %v1718 = vpop.f32.mrb[0].mxu0
        %v1719 = vadd.f32 %v1661, %v1718
        %v1720 = vpop.f32.mrb[0].mxu0
        %1721 = vmatprep.mubr.bf16.mxu0 0
        %1722 = vmatmul.mubr.bf16.gmra.mrb[0].mxu0 %v1676
        %v1723 = vpop.f32.mrb[0].mxu0
        %v1724 = vadd.f32 %v1666, %v1723
        %v1725 = vpop.f32.mrb[0].mxu0
        %v1726 = vpop.f32.mrb[0].mxu0
        %v1727 = vadd.f32 %v1669, %v1726
        %v1728 = vpop.f32.mrb[0].mxu0
        %1729 = vdwg.mxu0
        %s1730 = scalar_lea.vmem %s371, 64 [#allocation2]
        %v1731 = vld [vmem:[%s1730] sm:$0xff]
        %v1732 = vld [vmem:[%s1730 + $0x8] sm:$0xff]
        %v1733 = vld [vmem:[%s1730 + $0x10] sm:$0xff]
        %v1734 = vld [vmem:[%s1730 + $0x18] sm:$0xff]
        %1735 = vrot.lane.b32.xlu0 %v716, 112
        %v1736 = vpop.permute.xlu0 %1735
        %1737 = vrot.lane.b32.xlu0 %v726, 112
        %v1738 = vpop.permute.xlu0 %1737
        %v1740 = vsel %vm744, %v1736, 0
        %v1743 = vsel %vm744, %v1738, 0
        %1745 = vmatprep.subr.bf16.mxu0 0
        %1746 = vmatpush1.bf16.xpose.msra.mxu0 %v1743
        %1747 = vmatprep.subr.bf16.mxu0 0
        %1748 = vmatpush1.bf16.xpose.msra.mxu0 0
        %1749 = vmatprep.subr.bf16.mxu0 0
        %1750 = vmatpush1.bf16.xpose.msra.mxu0 0
        %1751 = vmatprep.subr.bf16.mxu0 0
        %1752 = vmatpush1.bf16.xpose.msra.mxu0 0
        %1753 = vmatprep.subr.bf16.mxu0 0
        %1754 = vmatpush1.bf16.xpose.msra.mxu0 0
        %1755 = vmatprep.subr.bf16.mxu0 0
        %1756 = vmatpush1.bf16.xpose.msra.mxu0 0
        %1757 = vmatprep.subr.bf16.mxu0 0
        %1758 = vmatpush1.bf16.xpose.msra.mxu0 0
        %1759 = vmatprep.subr.bf16.mxu0 0
        %1760 = vmatpush1.bf16.xpose.msra.mxu0 0
        %1761 = vmatprep.subr.bf16.mxu0 0
        %1762 = vmatpush1.bf16.xpose.msra.mxu0 0
        %1763 = vmatprep.subr.bf16.mxu0 0
        %1764 = vmatpush1.bf16.xpose.msra.mxu0 0
        %1765 = vmatprep.subr.bf16.mxu0 0
        %1766 = vmatpush1.bf16.xpose.msra.mxu0 0
        %1767 = vmatprep.subr.bf16.mxu0 0
        %1768 = vmatpush1.bf16.xpose.msra.mxu0 0
        %1769 = vmatprep.subr.bf16.mxu0 0
        %1770 = vmatpush1.bf16.xpose.msra.mxu0 0
        %1771 = vmatprep.subr.bf16.mxu0 0
        %1772 = vmatpush1.bf16.xpose.msra.mxu0 0
        %1773 = vmatprep.subr.bf16.mxu0 0
        %1774 = vmatpush1.bf16.xpose.msra.mxu0 0
        %1775 = vmatprep.subr.bf16.mxu0 0
        %1776 = vmatpush1.bf16.xpose.msra.mxu0 0
        %1777 = vmatprep.mubr.bf16.mxu0 0
        %1778 = vmatmul.mubr.bf16.gmra.mrb[0].mxu0 %v1740
        %v1779 = vpop.f32.mrb[0].mxu0
        %v1780 = vadd.f32 %v1731, %v1779
        %v1781 = vpop.f32.mrb[0].mxu0
        %v1782 = vpop.f32.mrb[0].mxu0
        %v1783 = vpop.f32.mrb[0].mxu0
        %1784 = vdwg.mxu0
        %1785 = vrot.lane.b32.xlu0 %v717, 112
        %v1786 = vpop.permute.xlu0 %1785
        %1787 = vrot.lane.b32.xlu0 %v727, 112
        %v1788 = vpop.permute.xlu0 %1787
        %v1790 = vsel %vm744, %v1786, 0
        %v1793 = vsel %vm744, %v1788, 0
        %1795 = vmatprep.subr.bf16.mxu0 0
        %1796 = vmatpush1.bf16.xpose.msra.mxu0 %v1793
        %1797 = vmatprep.subr.bf16.mxu0 0
        %1798 = vmatpush1.bf16.xpose.msra.mxu0 0
        %1799 = vmatprep.subr.bf16.mxu0 0
        %1800 = vmatpush1.bf16.xpose.msra.mxu0 0
        %1801 = vmatprep.subr.bf16.mxu0 0
        %1802 = vmatpush1.bf16.xpose.msra.mxu0 0
        %1803 = vmatprep.subr.bf16.mxu0 0
        %1804 = vmatpush1.bf16.xpose.msra.mxu0 0
        %1805 = vmatprep.subr.bf16.mxu0 0
        %1806 = vmatpush1.bf16.xpose.msra.mxu0 0
        %1807 = vmatprep.subr.bf16.mxu0 0
        %1808 = vmatpush1.bf16.xpose.msra.mxu0 0
        %1809 = vmatprep.subr.bf16.mxu0 0
        %1810 = vmatpush1.bf16.xpose.msra.mxu0 0
        %1811 = vmatprep.subr.bf16.mxu0 0
        %1812 = vmatpush1.bf16.xpose.msra.mxu0 0
        %1813 = vmatprep.subr.bf16.mxu0 0
        %1814 = vmatpush1.bf16.xpose.msra.mxu0 0
        %1815 = vmatprep.subr.bf16.mxu0 0
        %1816 = vmatpush1.bf16.xpose.msra.mxu0 0
        %1817 = vmatprep.subr.bf16.mxu0 0
        %1818 = vmatpush1.bf16.xpose.msra.mxu0 0
        %1819 = vmatprep.subr.bf16.mxu0 0
        %1820 = vmatpush1.bf16.xpose.msra.mxu0 0
        %1821 = vmatprep.subr.bf16.mxu0 0
        %1822 = vmatpush1.bf16.xpose.msra.mxu0 0
        %1823 = vmatprep.subr.bf16.mxu0 0
        %1824 = vmatpush1.bf16.xpose.msra.mxu0 0
        %1825 = vmatprep.subr.bf16.mxu0 0
        %1826 = vmatpush1.bf16.xpose.msra.mxu0 0
        %1827 = vmatprep.mubr.bf16.mxu0 0
        %1828 = vmatmul.mubr.bf16.gmra.mrb[0].mxu0 %v1790
        %v1829 = vpop.f32.mrb[0].mxu0
        %v1830 = vadd.f32 %v1732, %v1829
        %v1831 = vpop.f32.mrb[0].mxu0
        %v1832 = vpop.f32.mrb[0].mxu0
        %v1833 = vpop.f32.mrb[0].mxu0
        %1834 = vdwg.mxu0
        %1835 = vrot.lane.b32.xlu0 %v718, 112
        %v1836 = vpop.permute.xlu0 %1835
        %1837 = vrot.lane.b32.xlu0 %v728, 112
        %v1838 = vpop.permute.xlu0 %1837
        %v1840 = vsel %vm744, %v1836, 0
        %v1843 = vsel %vm744, %v1838, 0
        %1845 = vmatprep.subr.bf16.mxu0 0
        %1846 = vmatpush1.bf16.xpose.msra.mxu0 %v1843
        %1847 = vmatprep.subr.bf16.mxu0 0
        %1848 = vmatpush1.bf16.xpose.msra.mxu0 0
        %1849 = vmatprep.subr.bf16.mxu0 0
        %1850 = vmatpush1.bf16.xpose.msra.mxu0 0
        %1851 = vmatprep.subr.bf16.mxu0 0
        %1852 = vmatpush1.bf16.xpose.msra.mxu0 0
        %1853 = vmatprep.subr.bf16.mxu0 0
        %1854 = vmatpush1.bf16.xpose.msra.mxu0 0
        %1855 = vmatprep.subr.bf16.mxu0 0
        %1856 = vmatpush1.bf16.xpose.msra.mxu0 0
        %1857 = vmatprep.subr.bf16.mxu0 0
        %1858 = vmatpush1.bf16.xpose.msra.mxu0 0
        %1859 = vmatprep.subr.bf16.mxu0 0
        %1860 = vmatpush1.bf16.xpose.msra.mxu0 0
        %1861 = vmatprep.subr.bf16.mxu0 0
        %1862 = vmatpush1.bf16.xpose.msra.mxu0 0
        %1863 = vmatprep.subr.bf16.mxu0 0
        %1864 = vmatpush1.bf16.xpose.msra.mxu0 0
        %1865 = vmatprep.subr.bf16.mxu0 0
        %1866 = vmatpush1.bf16.xpose.msra.mxu0 0
        %1867 = vmatprep.subr.bf16.mxu0 0
        %1868 = vmatpush1.bf16.xpose.msra.mxu0 0
        %1869 = vmatprep.subr.bf16.mxu0 0
        %1870 = vmatpush1.bf16.xpose.msra.mxu0 0
        %1871 = vmatprep.subr.bf16.mxu0 0
        %1872 = vmatpush1.bf16.xpose.msra.mxu0 0
        %1873 = vmatprep.subr.bf16.mxu0 0
        %1874 = vmatpush1.bf16.xpose.msra.mxu0 0
        %1875 = vmatprep.subr.bf16.mxu0 0
        %1876 = vmatpush1.bf16.xpose.msra.mxu0 0
        %1877 = vmatprep.mubr.bf16.mxu0 0
        %1878 = vmatmul.mubr.bf16.gmra.mrb[0].mxu0 %v1840
        %v1879 = vpop.f32.mrb[0].mxu0
        %v1880 = vadd.f32 %v1733, %v1879
        %v1881 = vpop.f32.mrb[0].mxu0
        %v1882 = vpop.f32.mrb[0].mxu0
        %v1883 = vpop.f32.mrb[0].mxu0
        %1884 = vdwg.mxu0
        %1885 = vrot.lane.b32.xlu0 %v719, 112
        %v1886 = vpop.permute.xlu0 %1885
        %1887 = vrot.lane.b32.xlu0 %v729, 112
        %v1888 = vpop.permute.xlu0 %1887
        %v1890 = vsel %vm744, %v1886, 0
        %v1893 = vsel %vm744, %v1888, 0
        %1895 = vmatprep.subr.bf16.mxu0 0
        %1896 = vmatpush1.bf16.xpose.msra.mxu0 %v1893
        %1897 = vmatprep.subr.bf16.mxu0 0
        %1898 = vmatpush1.bf16.xpose.msra.mxu0 0
        %1899 = vmatprep.subr.bf16.mxu0 0
        %1900 = vmatpush1.bf16.xpose.msra.mxu0 0
        %1901 = vmatprep.subr.bf16.mxu0 0
        %1902 = vmatpush1.bf16.xpose.msra.mxu0 0
        %1903 = vmatprep.subr.bf16.mxu0 0
        %1904 = vmatpush1.bf16.xpose.msra.mxu0 0
        %1905 = vmatprep.subr.bf16.mxu0 0
        %1906 = vmatpush1.bf16.xpose.msra.mxu0 0
        %1907 = vmatprep.subr.bf16.mxu0 0
        %1908 = vmatpush1.bf16.xpose.msra.mxu0 0
        %1909 = vmatprep.subr.bf16.mxu0 0
        %1910 = vmatpush1.bf16.xpose.msra.mxu0 0
        %1911 = vmatprep.subr.bf16.mxu0 0
        %1912 = vmatpush1.bf16.xpose.msra.mxu0 0
        %1913 = vmatprep.subr.bf16.mxu0 0
        %1914 = vmatpush1.bf16.xpose.msra.mxu0 0
        %1915 = vmatprep.subr.bf16.mxu0 0
        %1916 = vmatpush1.bf16.xpose.msra.mxu0 0
        %1917 = vmatprep.subr.bf16.mxu0 0
        %1918 = vmatpush1.bf16.xpose.msra.mxu0 0
        %1919 = vmatprep.subr.bf16.mxu0 0
        %1920 = vmatpush1.bf16.xpose.msra.mxu0 0
        %1921 = vmatprep.subr.bf16.mxu0 0
        %1922 = vmatpush1.bf16.xpose.msra.mxu0 0
        %1923 = vmatprep.subr.bf16.mxu0 0
        %1924 = vmatpush1.bf16.xpose.msra.mxu0 0
        %1925 = vmatprep.subr.bf16.mxu0 0
        %1926 = vmatpush1.bf16.xpose.msra.mxu0 0
        %1927 = vmatprep.mubr.bf16.mxu0 0
        %1928 = vmatmul.mubr.bf16.gmra.mrb[0].mxu0 %v1890
        %v1929 = vpop.f32.mrb[0].mxu0
        %v1930 = vadd.f32 %v1734, %v1929
        %v1931 = vpop.f32.mrb[0].mxu0
        %v1932 = vpop.f32.mrb[0].mxu0
        %v1933 = vpop.f32.mrb[0].mxu0
        %1934 = vdwg.mxu0
        %v1935 = vsel %vm744, %v1780, -inf
        %1936 = vmax.xlane.f32.xlu0 %v1935
        %v1937 = vpop.xlane.xlu0 %1936
        %v1938 = vsel %vm744, %v1830, -inf
        %1939 = vmax.xlane.f32.xlu0 %v1938
        %v1940 = vpop.xlane.xlu0 %1939
        %v1941 = vsel %vm744, %v1880, -inf
        %1942 = vmax.xlane.f32.xlu0 %v1941
        %v1943 = vpop.xlane.xlu0 %1942
        %v1944 = vsel %vm744, %v1930, -inf
        %1945 = vmax.xlane.f32.xlu0 %v1944
        %v1946 = vpop.xlane.xlu0 %1945
        %v1947 = vsub.f32 %v1780, %v1937
        %v1948 = vsub.f32 %v1830, %v1940
        %v1949 = vsub.f32 %v1880, %v1943
        %v1950 = vsub.f32 %v1930, %v1946
        %v1951 = vmul.f32 %v1947, 1.442695
        %v1952 = vpow.pop %v1951
        %v1953 = vmul.f32 %v1948, 1.442695
        %v1954 = vpow.pop %v1953
        %v1955 = vmul.f32 %v1949, 1.442695
        %v1956 = vpow.pop %v1955
        %v1957 = vmul.f32 %v1950, 1.442695
        %v1958 = vpow.pop %v1957
        %v1959 = vsel %vm744, %v1952, 0.0
        %1960 = vadd.xlane.f32.xlu0 %v1959
        %v1961 = vpop.xlane.xlu0 %1960
        %v1962 = vsel %vm744, %v1954, 0.0
        %1963 = vadd.xlane.f32.xlu0 %v1962
        %v1964 = vpop.xlane.xlu0 %1963
        %v1965 = vsel %vm744, %v1956, 0.0
        %1966 = vadd.xlane.f32.xlu0 %v1965
        %v1967 = vpop.xlane.xlu0 %1966
        %v1968 = vsel %vm744, %v1958, 0.0
        %1969 = vadd.xlane.f32.xlu0 %v1968
        %v1970 = vpop.xlane.xlu0 %1969
        %v1971 = vrcp.pop %v1961
        %v1972 = vrcp.pop %v1964
        %v1973 = vrcp.pop %v1967
        %v1974 = vrcp.pop %v1970
        %v1975 = vmul.f32 %v1952, %v1971
        %v1976 = vmul.f32 %v1954, %v1972
        %v1977 = vmul.f32 %v1956, %v1973
        %v1978 = vmul.f32 %v1958, %v1974
        %v1979 = vpack.c.bf16 %v1975, %v1975
        %v1980 = vpack.c.bf16 %v1976, %v1976
        %v1981 = vpack.c.bf16 %v1977, %v1977
        %v1982 = vpack.c.bf16 %v1978, %v1978
        %1983 = vrot.lane.b32.xlu0 %v736, 112
        %v1984 = vpop.permute.xlu0 %1983
        %v1986 = vsel %vm744, %v1979, 0
        %v1989 = vsel %vm980, %v1984, 0
        %1991 = vmatprep.subr.bf16.mxu0 0
        %1992 = vmatpush1.bf16.msra.mxu0 %v1989
        %1993 = vmatprep.subr.bf16.mxu0 0
        %1994 = vmatpush1.bf16.msra.mxu0 0
        %1995 = vmatprep.subr.bf16.mxu0 0
        %1996 = vmatpush1.bf16.msra.mxu0 0
        %1997 = vmatprep.subr.bf16.mxu0 0
        %1998 = vmatpush1.bf16.msra.mxu0 0
        %1999 = vmatprep.subr.bf16.mxu0 0
        %2000 = vmatpush1.bf16.msra.mxu0 0
        %2001 = vmatprep.subr.bf16.mxu0 0
        %2002 = vmatpush1.bf16.msra.mxu0 0
        %2003 = vmatprep.subr.bf16.mxu0 0
        %2004 = vmatpush1.bf16.msra.mxu0 0
        %2005 = vmatprep.subr.bf16.mxu0 0
        %2006 = vmatpush1.bf16.msra.mxu0 0
        %2007 = vmatprep.subr.bf16.mxu0 0
        %2008 = vmatpush1.bf16.msra.mxu0 0
        %2009 = vmatprep.subr.bf16.mxu0 0
        %2010 = vmatpush1.bf16.msra.mxu0 0
        %2011 = vmatprep.subr.bf16.mxu0 0
        %2012 = vmatpush1.bf16.msra.mxu0 0
        %2013 = vmatprep.subr.bf16.mxu0 0
        %2014 = vmatpush1.bf16.msra.mxu0 0
        %2015 = vmatprep.subr.bf16.mxu0 0
        %2016 = vmatpush1.bf16.msra.mxu0 0
        %2017 = vmatprep.subr.bf16.mxu0 0
        %2018 = vmatpush1.bf16.msra.mxu0 0
        %2019 = vmatprep.subr.bf16.mxu0 0
        %2020 = vmatpush1.bf16.msra.mxu0 0
        %2021 = vmatprep.subr.bf16.mxu0 0
        %2022 = vmatpush1.bf16.msra.mxu0 0
        %2023 = vmatprep.mubr.bf16.mxu0 0
        %2024 = vmatmul.mubr.bf16.gmra.mrb[0].mxu0 %v1986
        %v2025 = vpop.f32.mrb[0].mxu0
        %v2026 = vadd.f32 0.0, %v2025
        %v2027 = vpop.f32.mrb[0].mxu0
        %v2028 = vpop.f32.mrb[0].mxu0
        %v2029 = vpop.f32.mrb[0].mxu0
        %2030 = vdwg.mxu0
        %2031 = vrot.lane.b32.xlu0 %v737, 112
        %v2032 = vpop.permute.xlu0 %2031
        %v2034 = vsel %vm744, %v1980, 0
        %v2037 = vsel %vm980, %v2032, 0
        %2039 = vmatprep.subr.bf16.mxu0 0
        %2040 = vmatpush1.bf16.msra.mxu0 %v2037
        %2041 = vmatprep.subr.bf16.mxu0 0
        %2042 = vmatpush1.bf16.msra.mxu0 0
        %2043 = vmatprep.subr.bf16.mxu0 0
        %2044 = vmatpush1.bf16.msra.mxu0 0
        %2045 = vmatprep.subr.bf16.mxu0 0
        %2046 = vmatpush1.bf16.msra.mxu0 0
        %2047 = vmatprep.subr.bf16.mxu0 0
        %2048 = vmatpush1.bf16.msra.mxu0 0
        %2049 = vmatprep.subr.bf16.mxu0 0
        %2050 = vmatpush1.bf16.msra.mxu0 0
        %2051 = vmatprep.subr.bf16.mxu0 0
        %2052 = vmatpush1.bf16.msra.mxu0 0
        %2053 = vmatprep.subr.bf16.mxu0 0
        %2054 = vmatpush1.bf16.msra.mxu0 0
        %2055 = vmatprep.subr.bf16.mxu0 0
        %2056 = vmatpush1.bf16.msra.mxu0 0
        %2057 = vmatprep.subr.bf16.mxu0 0
        %2058 = vmatpush1.bf16.msra.mxu0 0
        %2059 = vmatprep.subr.bf16.mxu0 0
        %2060 = vmatpush1.bf16.msra.mxu0 0
        %2061 = vmatprep.subr.bf16.mxu0 0
        %2062 = vmatpush1.bf16.msra.mxu0 0
        %2063 = vmatprep.subr.bf16.mxu0 0
        %2064 = vmatpush1.bf16.msra.mxu0 0
        %2065 = vmatprep.subr.bf16.mxu0 0
        %2066 = vmatpush1.bf16.msra.mxu0 0
        %2067 = vmatprep.subr.bf16.mxu0 0
        %2068 = vmatpush1.bf16.msra.mxu0 0
        %2069 = vmatprep.subr.bf16.mxu0 0
        %2070 = vmatpush1.bf16.msra.mxu0 0
        %2071 = vmatprep.mubr.bf16.mxu0 0
        %2072 = vmatmul.mubr.bf16.gmra.mrb[0].mxu0 %v2034
        %v2073 = vpop.f32.mrb[0].mxu0
        %v2074 = vadd.f32 0.0, %v2073
        %v2075 = vpop.f32.mrb[0].mxu0
        %v2076 = vpop.f32.mrb[0].mxu0
        %v2077 = vpop.f32.mrb[0].mxu0
        %2078 = vdwg.mxu0
        %2079 = vrot.lane.b32.xlu0 %v738, 112
        %v2080 = vpop.permute.xlu0 %2079
        %v2082 = vsel %vm744, %v1981, 0
        %v2085 = vsel %vm980, %v2080, 0
        %2087 = vmatprep.subr.bf16.mxu0 0
        %2088 = vmatpush1.bf16.msra.mxu0 %v2085
        %2089 = vmatprep.subr.bf16.mxu0 0
        %2090 = vmatpush1.bf16.msra.mxu0 0
        %2091 = vmatprep.subr.bf16.mxu0 0
        %2092 = vmatpush1.bf16.msra.mxu0 0
        %2093 = vmatprep.subr.bf16.mxu0 0
        %2094 = vmatpush1.bf16.msra.mxu0 0
        %2095 = vmatprep.subr.bf16.mxu0 0
        %2096 = vmatpush1.bf16.msra.mxu0 0
        %2097 = vmatprep.subr.bf16.mxu0 0
        %2098 = vmatpush1.bf16.msra.mxu0 0
        %2099 = vmatprep.subr.bf16.mxu0 0
        %2100 = vmatpush1.bf16.msra.mxu0 0
        %2101 = vmatprep.subr.bf16.mxu0 0
        %2102 = vmatpush1.bf16.msra.mxu0 0
        %2103 = vmatprep.subr.bf16.mxu0 0
        %2104 = vmatpush1.bf16.msra.mxu0 0
        %2105 = vmatprep.subr.bf16.mxu0 0
        %2106 = vmatpush1.bf16.msra.mxu0 0
        %2107 = vmatprep.subr.bf16.mxu0 0
        %2108 = vmatpush1.bf16.msra.mxu0 0
        %2109 = vmatprep.subr.bf16.mxu0 0
        %2110 = vmatpush1.bf16.msra.mxu0 0
        %2111 = vmatprep.subr.bf16.mxu0 0
        %2112 = vmatpush1.bf16.msra.mxu0 0
        %2113 = vmatprep.subr.bf16.mxu0 0
        %2114 = vmatpush1.bf16.msra.mxu0 0
        %2115 = vmatprep.subr.bf16.mxu0 0
        %2116 = vmatpush1.bf16.msra.mxu0 0
        %2117 = vmatprep.subr.bf16.mxu0 0
        %2118 = vmatpush1.bf16.msra.mxu0 0
        %2119 = vmatprep.mubr.bf16.mxu0 0
        %2120 = vmatmul.mubr.bf16.gmra.mrb[0].mxu0 %v2082
        %v2121 = vpop.f32.mrb[0].mxu0
        %v2122 = vadd.f32 0.0, %v2121
        %v2123 = vpop.f32.mrb[0].mxu0
        %v2124 = vpop.f32.mrb[0].mxu0
        %v2125 = vpop.f32.mrb[0].mxu0
        %2126 = vdwg.mxu0
        %2127 = vrot.lane.b32.xlu0 %v739, 112
        %v2128 = vpop.permute.xlu0 %2127
        %v2130 = vsel %vm744, %v1982, 0
        %v2133 = vsel %vm980, %v2128, 0
        %2135 = vmatprep.subr.bf16.mxu0 0
        %2136 = vmatpush1.bf16.msra.mxu0 %v2133
        %2137 = vmatprep.subr.bf16.mxu0 0
        %2138 = vmatpush1.bf16.msra.mxu0 0
        %2139 = vmatprep.subr.bf16.mxu0 0
        %2140 = vmatpush1.bf16.msra.mxu0 0
        %2141 = vmatprep.subr.bf16.mxu0 0
        %2142 = vmatpush1.bf16.msra.mxu0 0
        %2143 = vmatprep.subr.bf16.mxu0 0
        %2144 = vmatpush1.bf16.msra.mxu0 0
        %2145 = vmatprep.subr.bf16.mxu0 0
        %2146 = vmatpush1.bf16.msra.mxu0 0
        %2147 = vmatprep.subr.bf16.mxu0 0
        %2148 = vmatpush1.bf16.msra.mxu0 0
        %2149 = vmatprep.subr.bf16.mxu0 0
        %2150 = vmatpush1.bf16.msra.mxu0 0
        %2151 = vmatprep.subr.bf16.mxu0 0
        %2152 = vmatpush1.bf16.msra.mxu0 0
        %2153 = vmatprep.subr.bf16.mxu0 0
        %2154 = vmatpush1.bf16.msra.mxu0 0
        %2155 = vmatprep.subr.bf16.mxu0 0
        %2156 = vmatpush1.bf16.msra.mxu0 0
        %2157 = vmatprep.subr.bf16.mxu0 0
        %2158 = vmatpush1.bf16.msra.mxu0 0
        %2159 = vmatprep.subr.bf16.mxu0 0
        %2160 = vmatpush1.bf16.msra.mxu0 0
        %2161 = vmatprep.subr.bf16.mxu0 0
        %2162 = vmatpush1.bf16.msra.mxu0 0
        %2163 = vmatprep.subr.bf16.mxu0 0
        %2164 = vmatpush1.bf16.msra.mxu0 0
        %2165 = vmatprep.subr.bf16.mxu0 0
        %2166 = vmatpush1.bf16.msra.mxu0 0
        %2167 = vmatprep.mubr.bf16.mxu0 0
        %2168 = vmatmul.mubr.bf16.gmra.mrb[0].mxu0 %v2130
        %v2169 = vpop.f32.mrb[0].mxu0
        %v2170 = vadd.f32 0.0, %v2169
        %v2171 = vpop.f32.mrb[0].mxu0
        %v2172 = vpop.f32.mrb[0].mxu0
        %v2173 = vpop.f32.mrb[0].mxu0
        %2174 = vdwg.mxu0
        %v2175 = vpack.c.bf16 %v2074, %v2026
        %v2176 = vpack.c.bf16 %v2170, %v2122
        %s2177 = scalar_lea.vmem %s7, 8
        %v2178 = vld [vmem:[%s2177] sm:$0xf]
        %v2180 = vsel %vm744, %v2175, 0
        %v2183 = vsel %vm744, %v2176, 0
        %v2186 = vsel %vm980, %v2178, 0
        %2188 = vmatprep.subr.bf16.mxu0 0
        %2189 = vmatpush1.bf16.msra.mxu0 %v2186
        %2190 = vmatprep.subr.bf16.mxu0 0
        %2191 = vmatpush1.bf16.msra.mxu0 0
        %2192 = vmatprep.subr.bf16.mxu0 0
        %2193 = vmatpush1.bf16.msra.mxu0 0
        %2194 = vmatprep.subr.bf16.mxu0 0
        %2195 = vmatpush1.bf16.msra.mxu0 0
        %2196 = vmatprep.subr.bf16.mxu0 0
        %2197 = vmatpush1.bf16.msra.mxu0 0
        %2198 = vmatprep.subr.bf16.mxu0 0
        %2199 = vmatpush1.bf16.msra.mxu0 0
        %2200 = vmatprep.subr.bf16.mxu0 0
        %2201 = vmatpush1.bf16.msra.mxu0 0
        %2202 = vmatprep.subr.bf16.mxu0 0
        %2203 = vmatpush1.bf16.msra.mxu0 0
        %2204 = vmatprep.subr.bf16.mxu0 0
        %2205 = vmatpush1.bf16.msra.mxu0 0
        %2206 = vmatprep.subr.bf16.mxu0 0
        %2207 = vmatpush1.bf16.msra.mxu0 0
        %2208 = vmatprep.subr.bf16.mxu0 0
        %2209 = vmatpush1.bf16.msra.mxu0 0
        %2210 = vmatprep.subr.bf16.mxu0 0
        %2211 = vmatpush1.bf16.msra.mxu0 0
        %2212 = vmatprep.subr.bf16.mxu0 0
        %2213 = vmatpush1.bf16.msra.mxu0 0
        %2214 = vmatprep.subr.bf16.mxu0 0
        %2215 = vmatpush1.bf16.msra.mxu0 0
        %2216 = vmatprep.subr.bf16.mxu0 0
        %2217 = vmatpush1.bf16.msra.mxu0 0
        %2218 = vmatprep.subr.bf16.mxu0 0
        %2219 = vmatpush1.bf16.msra.mxu0 0
        %2220 = vmatprep.mubr.bf16.mxu0 0
        %2221 = vmatmul.mubr.bf16.gmra.mrb[0].mxu0 %v2180
        %v2222 = vpop.f32.mrb[0].mxu0
        %v2223 = vadd.f32 0.0, %v2222
        %v2224 = vpop.f32.mrb[0].mxu0
        %v2225 = vpop.f32.mrb[0].mxu0
        %v2226 = vadd.f32 0.0, %v2225
        %v2227 = vpop.f32.mrb[0].mxu0
        %2228 = vmatprep.mubr.bf16.mxu0 0
        %2229 = vmatmul.mubr.bf16.gmra.mrb[0].mxu0 %v2183
        %v2230 = vpop.f32.mrb[0].mxu0
        %v2231 = vadd.f32 0.0, %v2230
        %v2232 = vpop.f32.mrb[0].mxu0
        %v2233 = vpop.f32.mrb[0].mxu0
        %v2234 = vadd.f32 0.0, %v2233
        %v2235 = vpop.f32.mrb[0].mxu0
        %2236 = vdwg.mxu0
        %v2237 = vadd.f32 %v1716, %v2223
        %v2238 = vadd.f32 %v1719, %v2226
        %v2239 = vadd.f32 %v1724, %v2231
        %v2240 = vadd.f32 %v1727, %v2234
        %s2241 = scalar_lea.vmem %s371, 96 [#allocation2]
        %v2242 = vld [vmem:[%s2241] sm:$0xff]
        %v2243 = vld [vmem:[%s2241 + $0x8] sm:$0xff]
        %v2244 = vld [vmem:[%s2241 + $0x10] sm:$0xff]
        %v2245 = vld [vmem:[%s2241 + $0x18] sm:$0xff]
        %2246 = vrot.lane.b32.xlu0 %v716, 104
        %v2247 = vpop.permute.xlu0 %2246
        %2248 = vrot.lane.b32.xlu0 %v726, 104
        %v2249 = vpop.permute.xlu0 %2248
        %v2251 = vsel %vm744, %v2247, 0
        %v2254 = vsel %vm744, %v2249, 0
        %2256 = vmatprep.subr.bf16.mxu0 0
        %2257 = vmatpush1.bf16.xpose.msra.mxu0 %v2254
        %2258 = vmatprep.subr.bf16.mxu0 0
        %2259 = vmatpush1.bf16.xpose.msra.mxu0 0
        %2260 = vmatprep.subr.bf16.mxu0 0
        %2261 = vmatpush1.bf16.xpose.msra.mxu0 0
        %2262 = vmatprep.subr.bf16.mxu0 0
        %2263 = vmatpush1.bf16.xpose.msra.mxu0 0
        %2264 = vmatprep.subr.bf16.mxu0 0
        %2265 = vmatpush1.bf16.xpose.msra.mxu0 0
        %2266 = vmatprep.subr.bf16.mxu0 0
        %2267 = vmatpush1.bf16.xpose.msra.mxu0 0
        %2268 = vmatprep.subr.bf16.mxu0 0
        %2269 = vmatpush1.bf16.xpose.msra.mxu0 0
        %2270 = vmatprep.subr.bf16.mxu0 0
        %2271 = vmatpush1.bf16.xpose.msra.mxu0 0
        %2272 = vmatprep.subr.bf16.mxu0 0
        %2273 = vmatpush1.bf16.xpose.msra.mxu0 0
        %2274 = vmatprep.subr.bf16.mxu0 0
        %2275 = vmatpush1.bf16.xpose.msra.mxu0 0
        %2276 = vmatprep.subr.bf16.mxu0 0
        %2277 = vmatpush1.bf16.xpose.msra.mxu0 0
        %2278 = vmatprep.subr.bf16.mxu0 0
        %2279 = vmatpush1.bf16.xpose.msra.mxu0 0
        %2280 = vmatprep.subr.bf16.mxu0 0
        %2281 = vmatpush1.bf16.xpose.msra.mxu0 0
        %2282 = vmatprep.subr.bf16.mxu0 0
        %2283 = vmatpush1.bf16.xpose.msra.mxu0 0
        %2284 = vmatprep.subr.bf16.mxu0 0
        %2285 = vmatpush1.bf16.xpose.msra.mxu0 0
        %2286 = vmatprep.subr.bf16.mxu0 0
        %2287 = vmatpush1.bf16.xpose.msra.mxu0 0
        %2288 = vmatprep.mubr.bf16.mxu0 0
        %2289 = vmatmul.mubr.bf16.gmra.mrb[0].mxu0 %v2251
        %v2290 = vpop.f32.mrb[0].mxu0
        %v2291 = vadd.f32 %v2242, %v2290
        %v2292 = vpop.f32.mrb[0].mxu0
        %v2293 = vpop.f32.mrb[0].mxu0
        %v2294 = vpop.f32.mrb[0].mxu0
        %2295 = vdwg.mxu0
        %2296 = vrot.lane.b32.xlu0 %v717, 104
        %v2297 = vpop.permute.xlu0 %2296
        %2298 = vrot.lane.b32.xlu0 %v727, 104
        %v2299 = vpop.permute.xlu0 %2298
        %v2301 = vsel %vm744, %v2297, 0
        %v2304 = vsel %vm744, %v2299, 0
        %2306 = vmatprep.subr.bf16.mxu0 0
        %2307 = vmatpush1.bf16.xpose.msra.mxu0 %v2304
        %2308 = vmatprep.subr.bf16.mxu0 0
        %2309 = vmatpush1.bf16.xpose.msra.mxu0 0
        %2310 = vmatprep.subr.bf16.mxu0 0
        %2311 = vmatpush1.bf16.xpose.msra.mxu0 0
        %2312 = vmatprep.subr.bf16.mxu0 0
        %2313 = vmatpush1.bf16.xpose.msra.mxu0 0
        %2314 = vmatprep.subr.bf16.mxu0 0
        %2315 = vmatpush1.bf16.xpose.msra.mxu0 0
        %2316 = vmatprep.subr.bf16.mxu0 0
        %2317 = vmatpush1.bf16.xpose.msra.mxu0 0
        %2318 = vmatprep.subr.bf16.mxu0 0
        %2319 = vmatpush1.bf16.xpose.msra.mxu0 0
        %2320 = vmatprep.subr.bf16.mxu0 0
        %2321 = vmatpush1.bf16.xpose.msra.mxu0 0
        %2322 = vmatprep.subr.bf16.mxu0 0
        %2323 = vmatpush1.bf16.xpose.msra.mxu0 0
        %2324 = vmatprep.subr.bf16.mxu0 0
        %2325 = vmatpush1.bf16.xpose.msra.mxu0 0
        %2326 = vmatprep.subr.bf16.mxu0 0
        %2327 = vmatpush1.bf16.xpose.msra.mxu0 0
        %2328 = vmatprep.subr.bf16.mxu0 0
        %2329 = vmatpush1.bf16.xpose.msra.mxu0 0
        %2330 = vmatprep.subr.bf16.mxu0 0
        %2331 = vmatpush1.bf16.xpose.msra.mxu0 0
        %2332 = vmatprep.subr.bf16.mxu0 0
        %2333 = vmatpush1.bf16.xpose.msra.mxu0 0
        %2334 = vmatprep.subr.bf16.mxu0 0
        %2335 = vmatpush1.bf16.xpose.msra.mxu0 0
        %2336 = vmatprep.subr.bf16.mxu0 0
        %2337 = vmatpush1.bf16.xpose.msra.mxu0 0
        %2338 = vmatprep.mubr.bf16.mxu0 0
        %2339 = vmatmul.mubr.bf16.gmra.mrb[0].mxu0 %v2301
        %v2340 = vpop.f32.mrb[0].mxu0
        %v2341 = vadd.f32 %v2243, %v2340
        %v2342 = vpop.f32.mrb[0].mxu0
        %v2343 = vpop.f32.mrb[0].mxu0
        %v2344 = vpop.f32.mrb[0].mxu0
        %2345 = vdwg.mxu0
        %2346 = vrot.lane.b32.xlu0 %v718, 104
        %v2347 = vpop.permute.xlu0 %2346
        %2348 = vrot.lane.b32.xlu0 %v728, 104
        %v2349 = vpop.permute.xlu0 %2348
        %v2351 = vsel %vm744, %v2347, 0
        %v2354 = vsel %vm744, %v2349, 0
        %2356 = vmatprep.subr.bf16.mxu0 0
        %2357 = vmatpush1.bf16.xpose.msra.mxu0 %v2354
        %2358 = vmatprep.subr.bf16.mxu0 0
        %2359 = vmatpush1.bf16.xpose.msra.mxu0 0
        %2360 = vmatprep.subr.bf16.mxu0 0
        %2361 = vmatpush1.bf16.xpose.msra.mxu0 0
        %2362 = vmatprep.subr.bf16.mxu0 0
        %2363 = vmatpush1.bf16.xpose.msra.mxu0 0
        %2364 = vmatprep.subr.bf16.mxu0 0
        %2365 = vmatpush1.bf16.xpose.msra.mxu0 0
        %2366 = vmatprep.subr.bf16.mxu0 0
        %2367 = vmatpush1.bf16.xpose.msra.mxu0 0
        %2368 = vmatprep.subr.bf16.mxu0 0
        %2369 = vmatpush1.bf16.xpose.msra.mxu0 0
        %2370 = vmatprep.subr.bf16.mxu0 0
        %2371 = vmatpush1.bf16.xpose.msra.mxu0 0
        %2372 = vmatprep.subr.bf16.mxu0 0
        %2373 = vmatpush1.bf16.xpose.msra.mxu0 0
        %2374 = vmatprep.subr.bf16.mxu0 0
        %2375 = vmatpush1.bf16.xpose.msra.mxu0 0
        %2376 = vmatprep.subr.bf16.mxu0 0
        %2377 = vmatpush1.bf16.xpose.msra.mxu0 0
        %2378 = vmatprep.subr.bf16.mxu0 0
        %2379 = vmatpush1.bf16.xpose.msra.mxu0 0
        %2380 = vmatprep.subr.bf16.mxu0 0
        %2381 = vmatpush1.bf16.xpose.msra.mxu0 0
        %2382 = vmatprep.subr.bf16.mxu0 0
        %2383 = vmatpush1.bf16.xpose.msra.mxu0 0
        %2384 = vmatprep.subr.bf16.mxu0 0
        %2385 = vmatpush1.bf16.xpose.msra.mxu0 0
        %2386 = vmatprep.subr.bf16.mxu0 0
        %2387 = vmatpush1.bf16.xpose.msra.mxu0 0
        %2388 = vmatprep.mubr.bf16.mxu0 0
        %2389 = vmatmul.mubr.bf16.gmra.mrb[0].mxu0 %v2351
        %v2390 = vpop.f32.mrb[0].mxu0
        %v2391 = vadd.f32 %v2244, %v2390
        %v2392 = vpop.f32.mrb[0].mxu0
        %v2393 = vpop.f32.mrb[0].mxu0
        %v2394 = vpop.f32.mrb[0].mxu0
        %2395 = vdwg.mxu0
        %2396 = vrot.lane.b32.xlu0 %v719, 104
        %v2397 = vpop.permute.xlu0 %2396
        %2398 = vrot.lane.b32.xlu0 %v729, 104
        %v2399 = vpop.permute.xlu0 %2398
        %v2401 = vsel %vm744, %v2397, 0
        %v2404 = vsel %vm744, %v2399, 0
        %2406 = vmatprep.subr.bf16.mxu0 0
        %2407 = vmatpush1.bf16.xpose.msra.mxu0 %v2404
        %2408 = vmatprep.subr.bf16.mxu0 0
        %2409 = vmatpush1.bf16.xpose.msra.mxu0 0
        %2410 = vmatprep.subr.bf16.mxu0 0
        %2411 = vmatpush1.bf16.xpose.msra.mxu0 0
        %2412 = vmatprep.subr.bf16.mxu0 0
        %2413 = vmatpush1.bf16.xpose.msra.mxu0 0
        %2414 = vmatprep.subr.bf16.mxu0 0
        %2415 = vmatpush1.bf16.xpose.msra.mxu0 0
        %2416 = vmatprep.subr.bf16.mxu0 0
        %2417 = vmatpush1.bf16.xpose.msra.mxu0 0
        %2418 = vmatprep.subr.bf16.mxu0 0
        %2419 = vmatpush1.bf16.xpose.msra.mxu0 0
        %2420 = vmatprep.subr.bf16.mxu0 0
        %2421 = vmatpush1.bf16.xpose.msra.mxu0 0
        %2422 = vmatprep.subr.bf16.mxu0 0
        %2423 = vmatpush1.bf16.xpose.msra.mxu0 0
        %2424 = vmatprep.subr.bf16.mxu0 0
        %2425 = vmatpush1.bf16.xpose.msra.mxu0 0
        %2426 = vmatprep.subr.bf16.mxu0 0
        %2427 = vmatpush1.bf16.xpose.msra.mxu0 0
        %2428 = vmatprep.subr.bf16.mxu0 0
        %2429 = vmatpush1.bf16.xpose.msra.mxu0 0
        %2430 = vmatprep.subr.bf16.mxu0 0
        %2431 = vmatpush1.bf16.xpose.msra.mxu0 0
        %2432 = vmatprep.subr.bf16.mxu0 0
        %2433 = vmatpush1.bf16.xpose.msra.mxu0 0
        %2434 = vmatprep.subr.bf16.mxu0 0
        %2435 = vmatpush1.bf16.xpose.msra.mxu0 0
        %2436 = vmatprep.subr.bf16.mxu0 0
        %2437 = vmatpush1.bf16.xpose.msra.mxu0 0
        %2438 = vmatprep.mubr.bf16.mxu0 0
        %2439 = vmatmul.mubr.bf16.gmra.mrb[0].mxu0 %v2401
        %v2440 = vpop.f32.mrb[0].mxu0
        %v2441 = vadd.f32 %v2245, %v2440
        %v2442 = vpop.f32.mrb[0].mxu0
        %v2443 = vpop.f32.mrb[0].mxu0
        %v2444 = vpop.f32.mrb[0].mxu0
        %2445 = vdwg.mxu0
        %v2446 = vsel %vm744, %v2291, -inf
        %2447 = vmax.xlane.f32.xlu0 %v2446
        %v2448 = vpop.xlane.xlu0 %2447
        %v2449 = vsel %vm744, %v2341, -inf
        %2450 = vmax.xlane.f32.xlu0 %v2449
        %v2451 = vpop.xlane.xlu0 %2450
        %v2452 = vsel %vm744, %v2391, -inf
        %2453 = vmax.xlane.f32.xlu0 %v2452
        %v2454 = vpop.xlane.xlu0 %2453
        %v2455 = vsel %vm744, %v2441, -inf
        %2456 = vmax.xlane.f32.xlu0 %v2455
        %v2457 = vpop.xlane.xlu0 %2456
        %v2458 = vsub.f32 %v2291, %v2448
        %v2459 = vsub.f32 %v2341, %v2451
        %v2460 = vsub.f32 %v2391, %v2454
        %v2461 = vsub.f32 %v2441, %v2457
        %v2462 = vmul.f32 %v2458, 1.442695
        %v2463 = vpow.pop %v2462
        %v2464 = vmul.f32 %v2459, 1.442695
        %v2465 = vpow.pop %v2464
        %v2466 = vmul.f32 %v2460, 1.442695
        %v2467 = vpow.pop %v2466
        %v2468 = vmul.f32 %v2461, 1.442695
        %v2469 = vpow.pop %v2468
        %v2470 = vsel %vm744, %v2463, 0.0
        %2471 = vadd.xlane.f32.xlu0 %v2470
        %v2472 = vpop.xlane.xlu0 %2471
        %v2473 = vsel %vm744, %v2465, 0.0
        %2474 = vadd.xlane.f32.xlu0 %v2473
        %v2475 = vpop.xlane.xlu0 %2474
        %v2476 = vsel %vm744, %v2467, 0.0
        %2477 = vadd.xlane.f32.xlu0 %v2476
        %v2478 = vpop.xlane.xlu0 %2477
        %v2479 = vsel %vm744, %v2469, 0.0
        %2480 = vadd.xlane.f32.xlu0 %v2479
        %v2481 = vpop.xlane.xlu0 %2480
        %v2482 = vrcp.pop %v2472
        %v2483 = vrcp.pop %v2475
        %v2484 = vrcp.pop %v2478
        %v2485 = vrcp.pop %v2481
        %v2486 = vmul.f32 %v2463, %v2482
        %v2487 = vmul.f32 %v2465, %v2483
        %v2488 = vmul.f32 %v2467, %v2484
        %v2489 = vmul.f32 %v2469, %v2485
        %v2490 = vpack.c.bf16 %v2486, %v2486
        %v2491 = vpack.c.bf16 %v2487, %v2487
        %v2492 = vpack.c.bf16 %v2488, %v2488
        %v2493 = vpack.c.bf16 %v2489, %v2489
        %2494 = vrot.lane.b32.xlu0 %v736, 104
        %v2495 = vpop.permute.xlu0 %2494
        %v2497 = vsel %vm744, %v2490, 0
        %v2500 = vsel %vm980, %v2495, 0
        %2502 = vmatprep.subr.bf16.mxu0 0
        %2503 = vmatpush1.bf16.msra.mxu0 %v2500
        %2504 = vmatprep.subr.bf16.mxu0 0
        %2505 = vmatpush1.bf16.msra.mxu0 0
        %2506 = vmatprep.subr.bf16.mxu0 0
        %2507 = vmatpush1.bf16.msra.mxu0 0
        %2508 = vmatprep.subr.bf16.mxu0 0
        %2509 = vmatpush1.bf16.msra.mxu0 0
        %2510 = vmatprep.subr.bf16.mxu0 0
        %2511 = vmatpush1.bf16.msra.mxu0 0
        %2512 = vmatprep.subr.bf16.mxu0 0
        %2513 = vmatpush1.bf16.msra.mxu0 0
        %2514 = vmatprep.subr.bf16.mxu0 0
        %2515 = vmatpush1.bf16.msra.mxu0 0
        %2516 = vmatprep.subr.bf16.mxu0 0
        %2517 = vmatpush1.bf16.msra.mxu0 0
        %2518 = vmatprep.subr.bf16.mxu0 0
        %2519 = vmatpush1.bf16.msra.mxu0 0
        %2520 = vmatprep.subr.bf16.mxu0 0
        %2521 = vmatpush1.bf16.msra.mxu0 0
        %2522 = vmatprep.subr.bf16.mxu0 0
        %2523 = vmatpush1.bf16.msra.mxu0 0
        %2524 = vmatprep.subr.bf16.mxu0 0
        %2525 = vmatpush1.bf16.msra.mxu0 0
        %2526 = vmatprep.subr.bf16.mxu0 0
        %2527 = vmatpush1.bf16.msra.mxu0 0
        %2528 = vmatprep.subr.bf16.mxu0 0
        %2529 = vmatpush1.bf16.msra.mxu0 0
        %2530 = vmatprep.subr.bf16.mxu0 0
        %2531 = vmatpush1.bf16.msra.mxu0 0
        %2532 = vmatprep.subr.bf16.mxu0 0
        %2533 = vmatpush1.bf16.msra.mxu0 0
        %2534 = vmatprep.mubr.bf16.mxu0 0
        %2535 = vmatmul.mubr.bf16.gmra.mrb[0].mxu0 %v2497
        %v2536 = vpop.f32.mrb[0].mxu0
        %v2537 = vadd.f32 0.0, %v2536
        %v2538 = vpop.f32.mrb[0].mxu0
        %v2539 = vpop.f32.mrb[0].mxu0
        %v2540 = vpop.f32.mrb[0].mxu0
        %2541 = vdwg.mxu0
        %2542 = vrot.lane.b32.xlu0 %v737, 104
        %v2543 = vpop.permute.xlu0 %2542
        %v2545 = vsel %vm744, %v2491, 0
        %v2548 = vsel %vm980, %v2543, 0
        %2550 = vmatprep.subr.bf16.mxu0 0
        %2551 = vmatpush1.bf16.msra.mxu0 %v2548
        %2552 = vmatprep.subr.bf16.mxu0 0
        %2553 = vmatpush1.bf16.msra.mxu0 0
        %2554 = vmatprep.subr.bf16.mxu0 0
        %2555 = vmatpush1.bf16.msra.mxu0 0
        %2556 = vmatprep.subr.bf16.mxu0 0
        %2557 = vmatpush1.bf16.msra.mxu0 0
        %2558 = vmatprep.subr.bf16.mxu0 0
        %2559 = vmatpush1.bf16.msra.mxu0 0
        %2560 = vmatprep.subr.bf16.mxu0 0
        %2561 = vmatpush1.bf16.msra.mxu0 0
        %2562 = vmatprep.subr.bf16.mxu0 0
        %2563 = vmatpush1.bf16.msra.mxu0 0
        %2564 = vmatprep.subr.bf16.mxu0 0
        %2565 = vmatpush1.bf16.msra.mxu0 0
        %2566 = vmatprep.subr.bf16.mxu0 0
        %2567 = vmatpush1.bf16.msra.mxu0 0
        %2568 = vmatprep.subr.bf16.mxu0 0
        %2569 = vmatpush1.bf16.msra.mxu0 0
        %2570 = vmatprep.subr.bf16.mxu0 0
        %2571 = vmatpush1.bf16.msra.mxu0 0
        %2572 = vmatprep.subr.bf16.mxu0 0
        %2573 = vmatpush1.bf16.msra.mxu0 0
        %2574 = vmatprep.subr.bf16.mxu0 0
        %2575 = vmatpush1.bf16.msra.mxu0 0
        %2576 = vmatprep.subr.bf16.mxu0 0
        %2577 = vmatpush1.bf16.msra.mxu0 0
        %2578 = vmatprep.subr.bf16.mxu0 0
        %2579 = vmatpush1.bf16.msra.mxu0 0
        %2580 = vmatprep.subr.bf16.mxu0 0
        %2581 = vmatpush1.bf16.msra.mxu0 0
        %2582 = vmatprep.mubr.bf16.mxu0 0
        %2583 = vmatmul.mubr.bf16.gmra.mrb[0].mxu0 %v2545
        %v2584 = vpop.f32.mrb[0].mxu0
        %v2585 = vadd.f32 0.0, %v2584
        %v2586 = vpop.f32.mrb[0].mxu0
        %v2587 = vpop.f32.mrb[0].mxu0
        %v2588 = vpop.f32.mrb[0].mxu0
        %2589 = vdwg.mxu0
        %2590 = vrot.lane.b32.xlu0 %v738, 104
        %v2591 = vpop.permute.xlu0 %2590
        %v2593 = vsel %vm744, %v2492, 0
        %v2596 = vsel %vm980, %v2591, 0
        %2598 = vmatprep.subr.bf16.mxu0 0
        %2599 = vmatpush1.bf16.msra.mxu0 %v2596
        %2600 = vmatprep.subr.bf16.mxu0 0
        %2601 = vmatpush1.bf16.msra.mxu0 0
        %2602 = vmatprep.subr.bf16.mxu0 0
        %2603 = vmatpush1.bf16.msra.mxu0 0
        %2604 = vmatprep.subr.bf16.mxu0 0
        %2605 = vmatpush1.bf16.msra.mxu0 0
        %2606 = vmatprep.subr.bf16.mxu0 0
        %2607 = vmatpush1.bf16.msra.mxu0 0
        %2608 = vmatprep.subr.bf16.mxu0 0
        %2609 = vmatpush1.bf16.msra.mxu0 0
        %2610 = vmatprep.subr.bf16.mxu0 0
        %2611 = vmatpush1.bf16.msra.mxu0 0
        %2612 = vmatprep.subr.bf16.mxu0 0
        %2613 = vmatpush1.bf16.msra.mxu0 0
        %2614 = vmatprep.subr.bf16.mxu0 0
        %2615 = vmatpush1.bf16.msra.mxu0 0
        %2616 = vmatprep.subr.bf16.mxu0 0
        %2617 = vmatpush1.bf16.msra.mxu0 0
        %2618 = vmatprep.subr.bf16.mxu0 0
        %2619 = vmatpush1.bf16.msra.mxu0 0
        %2620 = vmatprep.subr.bf16.mxu0 0
        %2621 = vmatpush1.bf16.msra.mxu0 0
        %2622 = vmatprep.subr.bf16.mxu0 0
        %2623 = vmatpush1.bf16.msra.mxu0 0
        %2624 = vmatprep.subr.bf16.mxu0 0
        %2625 = vmatpush1.bf16.msra.mxu0 0
        %2626 = vmatprep.subr.bf16.mxu0 0
        %2627 = vmatpush1.bf16.msra.mxu0 0
        %2628 = vmatprep.subr.bf16.mxu0 0
        %2629 = vmatpush1.bf16.msra.mxu0 0
        %2630 = vmatprep.mubr.bf16.mxu0 0
        %2631 = vmatmul.mubr.bf16.gmra.mrb[0].mxu0 %v2593
        %v2632 = vpop.f32.mrb[0].mxu0
        %v2633 = vadd.f32 0.0, %v2632
        %v2634 = vpop.f32.mrb[0].mxu0
        %v2635 = vpop.f32.mrb[0].mxu0
        %v2636 = vpop.f32.mrb[0].mxu0
        %2637 = vdwg.mxu0
        %2638 = vrot.lane.b32.xlu0 %v739, 104
        %v2639 = vpop.permute.xlu0 %2638
        %v2641 = vsel %vm744, %v2493, 0
        %v2644 = vsel %vm980, %v2639, 0
        %2646 = vmatprep.subr.bf16.mxu0 0
        %2647 = vmatpush1.bf16.msra.mxu0 %v2644
        %2648 = vmatprep.subr.bf16.mxu0 0
        %2649 = vmatpush1.bf16.msra.mxu0 0
        %2650 = vmatprep.subr.bf16.mxu0 0
        %2651 = vmatpush1.bf16.msra.mxu0 0
        %2652 = vmatprep.subr.bf16.mxu0 0
        %2653 = vmatpush1.bf16.msra.mxu0 0
        %2654 = vmatprep.subr.bf16.mxu0 0
        %2655 = vmatpush1.bf16.msra.mxu0 0
        %2656 = vmatprep.subr.bf16.mxu0 0
        %2657 = vmatpush1.bf16.msra.mxu0 0
        %2658 = vmatprep.subr.bf16.mxu0 0
        %2659 = vmatpush1.bf16.msra.mxu0 0
        %2660 = vmatprep.subr.bf16.mxu0 0
        %2661 = vmatpush1.bf16.msra.mxu0 0
        %2662 = vmatprep.subr.bf16.mxu0 0
        %2663 = vmatpush1.bf16.msra.mxu0 0
        %2664 = vmatprep.subr.bf16.mxu0 0
        %2665 = vmatpush1.bf16.msra.mxu0 0
        %2666 = vmatprep.subr.bf16.mxu0 0
        %2667 = vmatpush1.bf16.msra.mxu0 0
        %2668 = vmatprep.subr.bf16.mxu0 0
        %2669 = vmatpush1.bf16.msra.mxu0 0
        %2670 = vmatprep.subr.bf16.mxu0 0
        %2671 = vmatpush1.bf16.msra.mxu0 0
        %2672 = vmatprep.subr.bf16.mxu0 0
        %2673 = vmatpush1.bf16.msra.mxu0 0
        %2674 = vmatprep.subr.bf16.mxu0 0
        %2675 = vmatpush1.bf16.msra.mxu0 0
        %2676 = vmatprep.subr.bf16.mxu0 0
        %2677 = vmatpush1.bf16.msra.mxu0 0
        %2678 = vmatprep.mubr.bf16.mxu0 0
        %2679 = vmatmul.mubr.bf16.gmra.mrb[0].mxu0 %v2641
        %v2680 = vpop.f32.mrb[0].mxu0
        %v2681 = vadd.f32 0.0, %v2680
        %v2682 = vpop.f32.mrb[0].mxu0
        %v2683 = vpop.f32.mrb[0].mxu0
        %v2684 = vpop.f32.mrb[0].mxu0
        %2685 = vdwg.mxu0
        %v2686 = vpack.c.bf16 %v2585, %v2537
        %v2687 = vpack.c.bf16 %v2681, %v2633
        %s2688 = scalar_lea.vmem %s7, 12
        %v2689 = vld [vmem:[%s2688] sm:$0xf]
        %v2691 = vsel %vm744, %v2686, 0
        %v2694 = vsel %vm744, %v2687, 0
        %v2697 = vsel %vm980, %v2689, 0
        %2699 = vmatprep.subr.bf16.mxu0 0
        %2700 = vmatpush1.bf16.msra.mxu0 %v2697
        %2701 = vmatprep.subr.bf16.mxu0 0
        %2702 = vmatpush1.bf16.msra.mxu0 0
        %2703 = vmatprep.subr.bf16.mxu0 0
        %2704 = vmatpush1.bf16.msra.mxu0 0
        %2705 = vmatprep.subr.bf16.mxu0 0
        %2706 = vmatpush1.bf16.msra.mxu0 0
        %2707 = vmatprep.subr.bf16.mxu0 0
        %2708 = vmatpush1.bf16.msra.mxu0 0
        %2709 = vmatprep.subr.bf16.mxu0 0
        %2710 = vmatpush1.bf16.msra.mxu0 0
        %2711 = vmatprep.subr.bf16.mxu0 0
        %2712 = vmatpush1.bf16.msra.mxu0 0
        %2713 = vmatprep.subr.bf16.mxu0 0
        %2714 = vmatpush1.bf16.msra.mxu0 0
        %2715 = vmatprep.subr.bf16.mxu0 0
        %2716 = vmatpush1.bf16.msra.mxu0 0
        %2717 = vmatprep.subr.bf16.mxu0 0
        %2718 = vmatpush1.bf16.msra.mxu0 0
        %2719 = vmatprep.subr.bf16.mxu0 0
        %2720 = vmatpush1.bf16.msra.mxu0 0
        %2721 = vmatprep.subr.bf16.mxu0 0
        %2722 = vmatpush1.bf16.msra.mxu0 0
        %2723 = vmatprep.subr.bf16.mxu0 0
        %2724 = vmatpush1.bf16.msra.mxu0 0
        %2725 = vmatprep.subr.bf16.mxu0 0
        %2726 = vmatpush1.bf16.msra.mxu0 0
        %2727 = vmatprep.subr.bf16.mxu0 0
        %2728 = vmatpush1.bf16.msra.mxu0 0
        %2729 = vmatprep.subr.bf16.mxu0 0
        %2730 = vmatpush1.bf16.msra.mxu0 0
        %2731 = vmatprep.mubr.bf16.mxu0 0
        %2732 = vmatmul.mubr.bf16.gmra.mrb[0].mxu0 %v2691
        %v2733 = vpop.f32.mrb[0].mxu0
        %v2734 = vadd.f32 0.0, %v2733
        %v2735 = vpop.f32.mrb[0].mxu0
        %v2736 = vpop.f32.mrb[0].mxu0
        %v2737 = vadd.f32 0.0, %v2736
        %v2738 = vpop.f32.mrb[0].mxu0
        %2739 = vmatprep.mubr.bf16.mxu0 0
        %2740 = vmatmul.mubr.bf16.gmra.mrb[0].mxu0 %v2694
        %v2741 = vpop.f32.mrb[0].mxu0
        %v2742 = vadd.f32 0.0, %v2741
        %v2743 = vpop.f32.mrb[0].mxu0
        %v2744 = vpop.f32.mrb[0].mxu0
        %v2745 = vadd.f32 0.0, %v2744
        %v2746 = vpop.f32.mrb[0].mxu0
        %2747 = vdwg.mxu0
        %v2748 = vadd.f32 %v2237, %v2734
        %v2749 = vadd.f32 %v2238, %v2737
        %v2750 = vadd.f32 %v2239, %v2742
        %v2751 = vadd.f32 %v2240, %v2745
        %v2753 = vlaneseq
        %v2754 = vshrl.u32 %v2753, 7
        %v2755 = vsub.s32 0, %v2754
        %v2756 = vrot.slane %v709, %v2755
        %v2758 = vadd.f32 %v2748, %v2756
        %v2759 = vadd.f32 %v2749, %v2756
        %v2760 = vadd.f32 %v2750, %v2756
        %v2761 = vadd.f32 %v2751, %v2756
        %2762 = vst.msk [vmem:[%s444] sm:$0xff] %vm485, %v2758
        %2763 = vst.msk [vmem:[%s444 + $0x8] sm:$0xff] %vm485, %v2759
        %2764 = vst.msk [vmem:[%s444 + $0x10] sm:$0xff] %vm485, %v2760
        %2765 = vst.msk [vmem:[%s444 + $0x18] sm:$0xff] %vm485, %v2761
        %s2766 = smul.u32 4, %s23
        %p2767 = scmp.lt.s32.totalorder %s2766, 7
        %s2768 = scalar_select %p2767, %s2766, 7
        %s2769 = smul.addr %s2768, 8
        %s2770 = scalar_lea.vmem %s9, %s2769
        // Predicated region
        $region61: #{tpu_custom_call.1} parent=55 // pred_check
          %p2771 = pneg %p250
        $region62: #{tpu_custom_call.1} parent=55 // pred_check_branch
          %2773 = sbr.rel (%p2771) target = $region64
        $region63: #{tpu_custom_call.1} parent=55 // pred_region
          %s2774 = smul.u32 4, %s23
        $region64: #{tpu_custom_call.1} parent=55 // pred_fallthru
          _
      $region56: #{tpu_custom_call.1} parent=5 // pred_fallthru
        _
      %p2775 = scmp.le.s32.totalorder 2, %s18
      // Predicated region
      $region65: #{tpu_custom_call.1} parent=5 // pred_check
        %p2776 = pneg %p2775
      $region66: #{tpu_custom_call.1} parent=5 // pred_check_branch
        %2778 = sbr.rel (%p2776) target = $region68
      $region67: #{tpu_custom_call.1} parent=5 // pred_region
        %s2779 = ssub.s32 %s18, 2
        // Predicated region
        $region69: #{tpu_custom_call.1} parent=67 // pred_check
          %p2780 = pneg %p256
        $region70: #{tpu_custom_call.1} parent=67 // pred_check_branch
          %2782 = sbr.rel (%p2780) target = $region72
        $region71: #{tpu_custom_call.1} parent=67 // pred_region
          %s2783 = smul.u32 4, %s24
          %p2784 = scmp.lt.s32.totalorder %s2783, 7
          %s2785 = scalar_select %p2784, %s2783, 7
          %s2786 = smul.addr %s2785, 8
          %s2787 = scalar_lea.vmem %s9, %s2786
        $region72: #{tpu_custom_call.1} parent=67 // pred_fallthru
          _
      $region68: #{tpu_custom_call.1} parent=5 // pred_fallthru
        _
    $region6: #{tpu_custom_call.1} parent=1 // loop_footer
      %s22 = sadd.s32 1, %s18
    $region7: #{tpu_custom_call.1} parent=1 // loop_footer_branch
      %17 = sbr.rel target = $region3
    $region8: #{tpu_custom_call.1} parent=1 // loop_exit
      _
    %2788 = vsyncpa [#allocation3], 1
    %s2789 = scalar_lea.sflag [#allocation3], 1
    %2790 = vsyncpa %s2789, 1

</llo_original>
